<compile_context>
chip_gen: v7x
topology: tpu7x:2x2x1
jax: 0.10.0
libtpu: 0.0.40
codegen_flags: <defaults>
</compile_context>

<pallas_src>
import jax
import jax.numpy as jnp
from jax.experimental import pallas as pl
from jax.experimental.pallas import tpu as pltpu

IN_FEATURES = 28 * 28   # 784
H1 = 16
H2 = 16
OUT = 10

HPAD = 128              # padded hidden width (lane-dense)
OUT_PAD = 128           # padded output width (lane-dense stores)
TB_CAP = 1024           # keeps double-buffered tiles well under v5e's 16 MiB scoped VMEM
                        # (and far under v7x's 64 MiB physical VMEM)


def mlp_v2_kernel(x_ref, w1_ref, b1_ref, w2_ref, b2_ref, w3_ref, b3_ref, o_ref):
    # One batch tile; all (tiny, padded-to-128) weights fully resident in VMEM.
    x = x_ref[...]                                                       # (tb, 784) bf16

    # fc1 + ReLU (bf16 inputs, f32 accumulation on the MXU; elementwise stays f32)
    h1 = jnp.dot(x, w1_ref[...], preferred_element_type=jnp.float32) + b1_ref[...]
    h1 = jnp.maximum(h1, 0.0)                                            # (tb, 128) f32

    # fc2 + ReLU (padded hidden units are exactly 0 -> contribute nothing)
    h2 = jnp.dot(h1, w2_ref[...], preferred_element_type=jnp.float32) + b2_ref[...]
    h2 = jnp.maximum(h2, 0.0)                                            # (tb, 128) f32

    # fc3 + softmax(dim=1); padded logit columns carry a -1e30 bias -> exp() == 0
    logits = jnp.dot(h2, w3_ref[...], preferred_element_type=jnp.float32) + b3_ref[...]
    m = jnp.max(logits, axis=-1, keepdims=True)
    e = jnp.exp(logits - m)
    denom = jnp.sum(e, axis=-1, keepdims=True)
    o_ref[...] = (e * pl.reciprocal(denom, approx=True)).astype(o_ref.dtype)  # (tb, 128)


def _choose_tb(B, requested=None):
    """Batch tile: multiple of 8 (16 preferred for bf16), <= TB_CAP, aim for >= 2 grid steps."""
    if requested is not None:
        assert requested > 0 and requested % 8 == 0, "tb must be a positive multiple of 8"
        return requested
    half = max(16, ((B // 2) // 16) * 16)   # >= 2 grid steps when B >= 32 (v7x megacore)
    return min(TB_CAP, half)


def _pad_params(params):
    """Pad weights/biases to lane-dense (128-wide) shapes; zero padding keeps math exact,
    except padded output-logit columns which get -1e30 bias so softmax ignores them."""
    w1, b1, w2, b2, w3, b3 = params

    def pad2(a, rows, cols, dtype):
        return jnp.pad(a.astype(dtype),
                       ((0, rows - a.shape[0]), (0, cols - a.shape[1])))

    w1p = pad2(w1, IN_FEATURES, HPAD, jnp.bfloat16)     # (784, 128) bf16
    b1p = pad2(b1, 1, HPAD, jnp.float32)                # (1, 128)  f32
    w2p = pad2(w2, HPAD, HPAD, jnp.float32)             # (128, 128) f32
    b2p = pad2(b2, 1, HPAD, jnp.float32)                # (1, 128)  f32
    w3p = pad2(w3, HPAD, OUT_PAD, jnp.float32)          # (128, 128) f32
    b3p = jnp.concatenate(
        [b3.astype(jnp.float32),
         jnp.full((1, OUT_PAD - OUT), -1e30, jnp.float32)], axis=1)      # (1, 128) f32
    return w1p, b1p, w2p, b2p, w3p, b3p


def mlp_v2_forward(x, params, *, tb=None):
    """x: (B, ...) -- flattened to (B, 784) like nn.Flatten. Returns (B, 10) softmax probs."""
    B = x.shape[0]
    x2d = x.reshape(B, -1)
    assert x2d.shape[1] == IN_FEATURES, f"expected {IN_FEATURES} features, got {x2d.shape[1]}"
    # bf16 halves HBM read bytes for the dominant input (fc1 activations).
    x2d = x2d.astype(jnp.bfloat16)

    tb = _choose_tb(B, tb)
    B_pad = ((B + tb - 1) // tb) * tb
    if B_pad != B:
        x2d = jnp.pad(x2d, ((0, B_pad - B), (0, 0)))

    w1p, b1p, w2p, b2p, w3p, b3p = _pad_params(params)

    grid = (B_pad // tb,)
    wspec = lambda shape: pl.BlockSpec(shape, lambda i: (0, 0))   # full weight, resident

    out = pl.pallas_call(
        mlp_v2_kernel,
        out_shape=jax.ShapeDtypeStruct((B_pad, OUT_PAD), jnp.float32),
        grid_spec=pltpu.PrefetchScalarGridSpec(
            num_scalar_prefetch=0,
            grid=grid,
            in_specs=[
                pl.BlockSpec((tb, IN_FEATURES), lambda i: (i, 0)),   # x batch tile (bf16)
                wspec((IN_FEATURES, HPAD)),                          # w1 (bf16)
                wspec((1, HPAD)),                                    # b1
                wspec((HPAD, HPAD)),                                 # w2
                wspec((1, HPAD)),                                    # b2
                wspec((HPAD, OUT_PAD)),                              # w3
                wspec((1, OUT_PAD)),                                 # b3
            ],
            out_specs=pl.BlockSpec((tb, OUT_PAD), lambda i: (i, 0)),  # lane-dense output
        ),
        compiler_params=pltpu.CompilerParams(
            dimension_semantics=("parallel",),   # batch axis shards across TCs (v7x megacore)
        ),
    )(x2d, w1p, b1p, w2p, b2p, w3p, b3p)
    # Drop batch padding and the 118 padded (zero-probability) classes.
    return out[:B, :OUT]


def init_params(key):
    """Deterministic init matching nn.Linear shapes (uniform +/- 1/sqrt(fan_in))."""
    def linear(k, fan_in, fan_out):
        kw, kb = jax.random.split(k)
        bound = 1.0 / jnp.sqrt(jnp.float32(fan_in))
        # stored as (in, out) so kernel uses x @ W
        w = jax.random.uniform(kw, (fan_in, fan_out), jnp.float32, -bound, bound)
        b = jax.random.uniform(kb, (1, fan_out), jnp.float32, -bound, bound)
        return w, b

    k1, k2, k3 = jax.random.split(key, 3)
    w1, b1 = linear(k1, IN_FEATURES, H1)
    w2, b2 = linear(k2, H1, H2)
    w3, b3 = linear(k3, H2, OUT)
    return (w1, b1, w2, b2, w3, b3)


if __name__ == "__main__":
    key = jax.random.PRNGKey(0)
    kx, kp = jax.random.split(key)

    # MNIST-like batch: (B, 1, 28, 28) NCHW; Flatten -> (B, 784).
    # B=256 -> tb=128, grid=(2,): exercises the batch pipeline and both TCs on v7x.
    B = 256
    x = jax.random.normal(kx, (B, 1, 28, 28), jnp.float32)
    params = init_params(kp)

    out = mlp_v2_forward(x, params)
    out = jax.block_until_ready(out)

    # Plain-JAX reference using the same bf16 fc1 inputs + f32 accumulation as the kernel.
    w1, b1, w2, b2, w3, b3 = params
    xf = x.reshape(B, -1)
    h1 = jnp.maximum(
        jnp.dot(xf.astype(jnp.bfloat16), w1.astype(jnp.bfloat16),
                preferred_element_type=jnp.float32) + b1, 0.0)
    h2 = jnp.maximum(h1 @ w2 + b2, 0.0)
    ref = jax.nn.softmax(h2 @ w3 + b3, axis=1)

    assert out.shape == (B, OUT)
    assert bool(jnp.all(jnp.isfinite(out)))
    # approx reciprocal + accumulation-order differences -> slightly relaxed tolerances
    assert jnp.allclose(jnp.sum(out, axis=1), 1.0, atol=5e-3)
    assert jnp.allclose(out, ref, atol=3e-3), float(jnp.max(jnp.abs(out - ref)))

    print("KERNEL_OK")
</pallas_src>

<mosaic_0001>
module attributes {stable_mosaic.version = 11 : i64} {
  func.func @mlp_v2_kernel(%arg0: i32, %arg1: memref<128x784xbf16, #tpu.memory_space<vmem>>, %arg2: memref<784x128xbf16, #tpu.memory_space<vmem>>, %arg3: memref<1x128xf32, #tpu.memory_space<vmem>>, %arg4: memref<128x128xf32, #tpu.memory_space<vmem>>, %arg5: memref<1x128xf32, #tpu.memory_space<vmem>>, %arg6: memref<128x128xf32, #tpu.memory_space<vmem>>, %arg7: memref<1x128xf32, #tpu.memory_space<vmem>>, %arg8: memref<128x128xf32, #tpu.memory_space<vmem>>) attributes {dimension_semantics = [#tpu.dimension_semantics<parallel>], iteration_bounds = array<i64: 2>, scalar_prefetch = 0 : i64, scratch_operands = 0 : i64, tpu.core_type = #tpu.core_type<tc>, window_params = [{transform_indices = @transform_0, window_bounds = array<i64: 128, 784>}, {pipeline_mode = #tpu.pipeline_mode<synchronous>, transform_indices = @transform_1, window_bounds = array<i64: 784, 128>}, {pipeline_mode = #tpu.pipeline_mode<synchronous>, transform_indices = @transform_2, window_bounds = array<i64: 1, 128>}, {pipeline_mode = #tpu.pipeline_mode<synchronous>, transform_indices = @transform_3, window_bounds = array<i64: 128, 128>}, {pipeline_mode = #tpu.pipeline_mode<synchronous>, transform_indices = @transform_4, window_bounds = array<i64: 1, 128>}, {pipeline_mode = #tpu.pipeline_mode<synchronous>, transform_indices = @transform_5, window_bounds = array<i64: 128, 128>}, {pipeline_mode = #tpu.pipeline_mode<synchronous>, transform_indices = @transform_6, window_bounds = array<i64: 1, 128>}, {transform_indices = @transform_7, window_bounds = array<i64: 128, 128>}]} {
    %c0 = arith.constant 0 : index
    %c0_0 = arith.constant 0 : index
    %0 = vector.load %arg1[%c0, %c0_0] : memref<128x784xbf16, #tpu.memory_space<vmem>>, vector<128x784xbf16>
    %c0_1 = arith.constant 0 : index
    %c0_2 = arith.constant 0 : index
    %1 = vector.load %arg2[%c0_1, %c0_2] : memref<784x128xbf16, #tpu.memory_space<vmem>>, vector<784x128xbf16>
    %cst = arith.constant dense<0.000000e+00> : vector<128x128xf32>
    %2 = tpu.matmul %0, %1, %cst {dimension_numbers = #tpu.dot_dimension_numbers<[1], [0], [0], [1], [0, 0, 1, 1], [], []>} : vector<128x784xbf16>, vector<784x128xbf16>, vector<128x128xf32> -> vector<128x128xf32>
    %c0_3 = arith.constant 0 : index
    %c0_4 = arith.constant 0 : index
    %3 = vector.load %arg3[%c0_3, %c0_4] : memref<1x128xf32, #tpu.memory_space<vmem>>, vector<1x128xf32>
    %4 = vector.broadcast %3 : vector<1x128xf32> to vector<128x128xf32>
    %5 = arith.addf %2, %4 : vector<128x128xf32>
    %cst_5 = arith.constant 0.000000e+00 : f32
    %6 = vector.broadcast %cst_5 : f32 to vector<128x128xf32>
    %7 = arith.maximumf %5, %6 : vector<128x128xf32>
    %c0_6 = arith.constant 0 : index
    %c0_7 = arith.constant 0 : index
    %8 = vector.load %arg4[%c0_6, %c0_7] : memref<128x128xf32, #tpu.memory_space<vmem>>, vector<128x128xf32>
    %cst_8 = arith.constant dense<0.000000e+00> : vector<128x128xf32>
    %9 = tpu.matmul %7, %8, %cst_8 {dimension_numbers = #tpu.dot_dimension_numbers<[1], [0], [0], [1], [0, 0, 1, 1], [], []>} : vector<128x128xf32>, vector<128x128xf32>, vector<128x128xf32> -> vector<128x128xf32>
    %c0_9 = arith.constant 0 : index
    %c0_10 = arith.constant 0 : index
    %10 = vector.load %arg5[%c0_9, %c0_10] : memref<1x128xf32, #tpu.memory_space<vmem>>, vector<1x128xf32>
    %11 = vector.broadcast %10 : vector<1x128xf32> to vector<128x128xf32>
    %12 = arith.addf %9, %11 : vector<128x128xf32>
    %cst_11 = arith.constant 0.000000e+00 : f32
    %13 = vector.broadcast %cst_11 : f32 to vector<128x128xf32>
    %14 = arith.maximumf %12, %13 : vector<128x128xf32>
    %c0_12 = arith.constant 0 : index
    %c0_13 = arith.constant 0 : index
    %15 = vector.load %arg6[%c0_12, %c0_13] : memref<128x128xf32, #tpu.memory_space<vmem>>, vector<128x128xf32>
    %cst_14 = arith.constant dense<0.000000e+00> : vector<128x128xf32>
    %16 = tpu.matmul %14, %15, %cst_14 {dimension_numbers = #tpu.dot_dimension_numbers<[1], [0], [0], [1], [0, 0, 1, 1], [], []>} : vector<128x128xf32>, vector<128x128xf32>, vector<128x128xf32> -> vector<128x128xf32>
    %c0_15 = arith.constant 0 : index
    %c0_16 = arith.constant 0 : index
    %17 = vector.load %arg7[%c0_15, %c0_16] : memref<1x128xf32, #tpu.memory_space<vmem>>, vector<1x128xf32>
    %18 = vector.broadcast %17 : vector<1x128xf32> to vector<128x128xf32>
    %19 = arith.addf %16, %18 : vector<128x128xf32>
    %cst_17 = arith.constant dense<0xFF800000> : vector<128xf32>
    %20 = vector.multi_reduction <maximumf>, %19, %cst_17 [1] : vector<128x128xf32> to vector<128xf32>
    %21 = vector.shape_cast %20 : vector<128xf32> to vector<128x1xf32>
    %22 = vector.broadcast %21 : vector<128x1xf32> to vector<128x128xf32>
    %23 = arith.subf %19, %22 : vector<128x128xf32>
    %24 = math.exp %23 : vector<128x128xf32>
    %cst_18 = arith.constant dense<0.000000e+00> : vector<128xf32>
    %25 = vector.multi_reduction <add>, %24, %cst_18 [1] : vector<128x128xf32> to vector<128xf32>
    %26 = vector.shape_cast %25 : vector<128xf32> to vector<128x1xf32>
    %27 = tpu.reciprocal %26 {approx = true} : vector<128x1xf32> -> vector<128x1xf32>
    %28 = vector.broadcast %27 : vector<128x1xf32> to vector<128x128xf32>
    %29 = arith.mulf %24, %28 : vector<128x128xf32>
    %c0_19 = arith.constant 0 : index
    %c0_20 = arith.constant 0 : index
    %30 = vector.load %arg8[%c0_19, %c0_20] : memref<128x128xf32, #tpu.memory_space<vmem>>, vector<128x128xf32>
    tpu.vector_store %arg8[%c0_19, %c0_20], %29 {strides = array<i32>} : memref<128x128xf32, #tpu.memory_space<vmem>>, vector<128x128xf32>,
    return
  }
  func.func @transform_0(%arg0: i32) -> (i32, i32) {
    %c0_i32 = arith.constant 0 : i32
    %c0_i32_0 = arith.constant 0 : i32
    return %arg0, %c0_i32 : i32, i32
  }
  func.func @transform_1(%arg0: i32) -> (i32, i32) {
    %c0_i32 = arith.constant 0 : i32
    %c0_i32_0 = arith.constant 0 : i32
    %c0_i32_1 = arith.constant 0 : i32
    return %c0_i32, %c0_i32_0 : i32, i32
  }
  func.func @transform_2(%arg0: i32) -> (i32, i32) {
    %c0_i32 = arith.constant 0 : i32
    %c0_i32_0 = arith.constant 0 : i32
    %c0_i32_1 = arith.constant 0 : i32
    return %c0_i32, %c0_i32_0 : i32, i32
  }
  func.func @transform_3(%arg0: i32) -> (i32, i32) {
    %c0_i32 = arith.constant 0 : i32
    %c0_i32_0 = arith.constant 0 : i32
    %c0_i32_1 = arith.constant 0 : i32
    return %c0_i32, %c0_i32_0 : i32, i32
  }
  func.func @transform_4(%arg0: i32) -> (i32, i32) {
    %c0_i32 = arith.constant 0 : i32
    %c0_i32_0 = arith.constant 0 : i32
    %c0_i32_1 = arith.constant 0 : i32
    return %c0_i32, %c0_i32_0 : i32, i32
  }
  func.func @transform_5(%arg0: i32) -> (i32, i32) {
    %c0_i32 = arith.constant 0 : i32
    %c0_i32_0 = arith.constant 0 : i32
    %c0_i32_1 = arith.constant 0 : i32
    return %c0_i32, %c0_i32_0 : i32, i32
  }
  func.func @transform_6(%arg0: i32) -> (i32, i32) {
    %c0_i32 = arith.constant 0 : i32
    %c0_i32_0 = arith.constant 0 : i32
    %c0_i32_1 = arith.constant 0 : i32
    return %c0_i32, %c0_i32_0 : i32, i32
  }
  func.func @transform_7(%arg0: i32) -> (i32, i32) {
    %c0_i32 = arith.constant 0 : i32
    %c0_i32_0 = arith.constant 0 : i32
    return %arg0, %c0_i32 : i32, i32
  }
}

</mosaic_0001>

<llo_original>
// kernel: tpu_custom_call.1
$region0: #{tpu_custom_call.1}
  #allocation0 [shape = 'u32[]', space=smem, size = 0x4, offset = 0x4, fixed_abs, tag = 'smem constant byte address 0x4 - core index']
  #allocation1 [shape = 'u32[144,128]{1,0:T(1,128)}', space=vmem, size = 0x12000, scoped, tag = 'internal scratch']
  %s0 = inlined_call_operand.vmem [shape: bf16[256,784], index: 0, kind: input, shape index: {}]
  %s1 = inlined_call_operand.vmem [shape: bf16[784,128], index: 1, kind: input, shape index: {}]
  %s2 = inlined_call_operand.vmem [shape: f32[1,128], index: 2, kind: input, shape index: {}]
  %s3 = inlined_call_operand.vmem [shape: f32[128,128], index: 3, kind: input, shape index: {}]
  %s4 = inlined_call_operand.vmem [shape: f32[1,128], index: 4, kind: input, shape index: {}]
  %s5 = inlined_call_operand.vmem [shape: f32[128,128], index: 5, kind: input, shape index: {}]
  %s6 = inlined_call_operand.vmem [shape: f32[1,128], index: 6, kind: input, shape index: {}]
  %s7 = inlined_call_operand.hbm [shape: f32[256,128], index: 7, kind: output, shape index: {}]
  %s8 = sld [smem:[#allocation0]]
  $region61: #{tpu_custom_call.1} parent=0
    _
  %s10 = ssub.s32 1, %s8
  %s11 = scalar_select 0, %s10, %s8
  $region1: #{tpu_custom_call.1} parent=0
    #allocation2 [shape = 'u8[131072]{0}', space=vmem, size = 0x20000, scoped, tag = 'output window, operand 0']
    #allocation3 [shape = 's32[2]{0}', space=sflag, size = 0x8, scoped, tag = 'scoped memory for tpu_custom_call.1']
    %12 = vsyncpa [#allocation3], 0
    %s13 = scalar_lea.sflag [#allocation3], 1
    %14 = vsyncpa %s13, 0
    loop: start=0, step=1, limit=4
    $region2: #{tpu_custom_call.1} parent=1 // loop_pre_header
      _
    $region3: #{tpu_custom_call.1} parent=1 // loop_header
      %s16 = sphi 0, %s20
      %p17 = scmp.ge.s32.totalorder %s16, 4
      %s26 = sphi 0, %s28
      %s29 = sphi 0, %s26
      %s30 = sphi 0, %s29
      %s46 = sphi 0, %s30
      %s50 = sphi 0, %s50
      %s52 = sphi 0, %s50
      %s53 = sphi 0, %s52
      %s67 = sphi 0, %s53
      %s71 = sphi 0, %s71
      %s73 = sphi 0, %s71
      %s74 = sphi 0, %s73
      %s88 = sphi 0, %s74
      %s92 = sphi 0, %s92
      %s94 = sphi 0, %s92
      %s95 = sphi 0, %s94
      %s109 = sphi 0, %s95
      %s113 = sphi 0, %s113
      %s115 = sphi 0, %s113
      %s116 = sphi 0, %s115
      %s130 = sphi 0, %s116
      %s134 = sphi 0, %s134
      %s136 = sphi 0, %s134
      %s137 = sphi 0, %s136
      %s151 = sphi 0, %s137
      %s155 = sphi 0, %s155
      %s157 = sphi 0, %s155
      %s158 = sphi 0, %s157
      %s172 = sphi 0, %s158
      %s178 = sphi 0, %s180
      %s181 = sphi 0, %s178
      %s182 = sphi 0, %s181
      %s198 = sphi 0, %s182
    $region4: #{tpu_custom_call.1} parent=1 // loop_header_branch
      %19 = sbr.rel (%p17) target = $region8
    $region5: #{tpu_custom_call.1} parent=1 // loop_body
      %s21 = ssub.s32 %s16, 1
      %s22 = ssub.s32 %s16, 2
      %s23 = sadd.s32 %s16, 1
      %s24 = ssub.s32 %s16, %s23
      %p25 = scmp.eq.s32.totalorder %s24, 0
      %s27 = sadd.s32 %s26, 1
      %s28 = scalar_select %p25, %s26, %s27
      %p31 = pneg %p25
      %p32 = scmp.eq.s32.totalorder %s16, 1
      %p33 = por %p31, %p32
      %p34 = scmp.ne.s32.totalorder %s26, %s29
      %p35 = scmp.eq.s32.totalorder %s16, 0
      %p36 = por %p34, %p35
      %p37 = scmp.ne.s32.totalorder %s26, %s29
      %p38 = scmp.eq.s32.totalorder %s21, 1
      %p39 = por %p37, %p38
      %p40 = scmp.ne.s32.totalorder %s29, %s30
      %p41 = scmp.eq.s32.totalorder %s21, 0
      %p42 = por %p40, %p41
      %p43 = scmp.ne.s32.totalorder %s29, %s30
      %p44 = scmp.eq.s32.totalorder %s22, 1
      %p45 = por %p43, %p44
      %p47 = scmp.ne.s32.totalorder %s30, %s46
      %p48 = scmp.eq.s32.totalorder %s22, 0
      %p49 = por %p47, %p48
      %s51 = sadd.s32 %s50, 1
      %p54 = scmp.eq.s32.totalorder %s16, 1
      %p55 = scmp.ne.s32.totalorder %s50, %s52
      %p56 = scmp.eq.s32.totalorder %s16, 0
      %p57 = por %p55, %p56
      %p58 = scmp.ne.s32.totalorder %s50, %s52
      %p59 = scmp.eq.s32.totalorder %s21, 1
      %p60 = por %p58, %p59
      %p61 = scmp.ne.s32.totalorder %s52, %s53
      %p62 = scmp.eq.s32.totalorder %s21, 0
      %p63 = por %p61, %p62
      %p64 = scmp.ne.s32.totalorder %s52, %s53
      %p65 = scmp.eq.s32.totalorder %s22, 1
      %p66 = por %p64, %p65
      %p68 = scmp.ne.s32.totalorder %s53, %s67
      %p69 = scmp.eq.s32.totalorder %s22, 0
      %p70 = por %p68, %p69
      %s72 = sadd.s32 %s71, 1
      %p75 = scmp.eq.s32.totalorder %s16, 1
      %p76 = scmp.ne.s32.totalorder %s71, %s73
      %p77 = scmp.eq.s32.totalorder %s16, 0
      %p78 = por %p76, %p77
      %p79 = scmp.ne.s32.totalorder %s71, %s73
      %p80 = scmp.eq.s32.totalorder %s21, 1
      %p81 = por %p79, %p80
      %p82 = scmp.ne.s32.totalorder %s73, %s74
      %p83 = scmp.eq.s32.totalorder %s21, 0
      %p84 = por %p82, %p83
      %p85 = scmp.ne.s32.totalorder %s73, %s74
      %p86 = scmp.eq.s32.totalorder %s22, 1
      %p87 = por %p85, %p86
      %p89 = scmp.ne.s32.totalorder %s74, %s88
      %p90 = scmp.eq.s32.totalorder %s22, 0
      %p91 = por %p89, %p90
      %s93 = sadd.s32 %s92, 1
      %p96 = scmp.eq.s32.totalorder %s16, 1
      %p97 = scmp.ne.s32.totalorder %s92, %s94
      %p98 = scmp.eq.s32.totalorder %s16, 0
      %p99 = por %p97, %p98
      %p100 = scmp.ne.s32.totalorder %s92, %s94
      %p101 = scmp.eq.s32.totalorder %s21, 1
      %p102 = por %p100, %p101
      %p103 = scmp.ne.s32.totalorder %s94, %s95
      %p104 = scmp.eq.s32.totalorder %s21, 0
      %p105 = por %p103, %p104
      %p106 = scmp.ne.s32.totalorder %s94, %s95
      %p107 = scmp.eq.s32.totalorder %s22, 1
      %p108 = por %p106, %p107
      %p110 = scmp.ne.s32.totalorder %s95, %s109
      %p111 = scmp.eq.s32.totalorder %s22, 0
      %p112 = por %p110, %p111
      %s114 = sadd.s32 %s113, 1
      %p117 = scmp.eq.s32.totalorder %s16, 1
      %p118 = scmp.ne.s32.totalorder %s113, %s115
      %p119 = scmp.eq.s32.totalorder %s16, 0
      %p120 = por %p118, %p119
      %p121 = scmp.ne.s32.totalorder %s113, %s115
      %p122 = scmp.eq.s32.totalorder %s21, 1
      %p123 = por %p121, %p122
      %p124 = scmp.ne.s32.totalorder %s115, %s116
      %p125 = scmp.eq.s32.totalorder %s21, 0
      %p126 = por %p124, %p125
      %p127 = scmp.ne.s32.totalorder %s115, %s116
      %p128 = scmp.eq.s32.totalorder %s22, 1
      %p129 = por %p127, %p128
      %p131 = scmp.ne.s32.totalorder %s116, %s130
      %p132 = scmp.eq.s32.totalorder %s22, 0
      %p133 = por %p131, %p132
      %s135 = sadd.s32 %s134, 1
      %p138 = scmp.eq.s32.totalorder %s16, 1
      %p139 = scmp.ne.s32.totalorder %s134, %s136
      %p140 = scmp.eq.s32.totalorder %s16, 0
      %p141 = por %p139, %p140
      %p142 = scmp.ne.s32.totalorder %s134, %s136
      %p143 = scmp.eq.s32.totalorder %s21, 1
      %p144 = por %p142, %p143
      %p145 = scmp.ne.s32.totalorder %s136, %s137
      %p146 = scmp.eq.s32.totalorder %s21, 0
      %p147 = por %p145, %p146
      %p148 = scmp.ne.s32.totalorder %s136, %s137
      %p149 = scmp.eq.s32.totalorder %s22, 1
      %p150 = por %p148, %p149
      %p152 = scmp.ne.s32.totalorder %s137, %s151
      %p153 = scmp.eq.s32.totalorder %s22, 0
      %p154 = por %p152, %p153
      %s156 = sadd.s32 %s155, 1
      %p159 = scmp.eq.s32.totalorder %s16, 1
      %p160 = scmp.ne.s32.totalorder %s155, %s157
      %p161 = scmp.eq.s32.totalorder %s16, 0
      %p162 = por %p160, %p161
      %p163 = scmp.ne.s32.totalorder %s155, %s157
      %p164 = scmp.eq.s32.totalorder %s21, 1
      %p165 = por %p163, %p164
      %p166 = scmp.ne.s32.totalorder %s157, %s158
      %p167 = scmp.eq.s32.totalorder %s21, 0
      %p168 = por %p166, %p167
      %p169 = scmp.ne.s32.totalorder %s157, %s158
      %p170 = scmp.eq.s32.totalorder %s22, 1
      %p171 = por %p169, %p170
      %p173 = scmp.ne.s32.totalorder %s158, %s172
      %p174 = scmp.eq.s32.totalorder %s22, 0
      %p175 = por %p173, %p174
      %s176 = ssub.s32 %s16, %s23
      %p177 = scmp.eq.s32.totalorder %s176, 0
      %s179 = sadd.s32 %s178, 1
      %s180 = scalar_select %p177, %s178, %s179
      %p183 = pneg %p177
      %p184 = scmp.eq.s32.totalorder %s16, 1
      %p185 = por %p183, %p184
      %p186 = scmp.ne.s32.totalorder %s178, %s181
      %p187 = scmp.eq.s32.totalorder %s16, 0
      %p188 = por %p186, %p187
      %p189 = scmp.ne.s32.totalorder %s178, %s181
      %p190 = scmp.eq.s32.totalorder %s21, 1
      %p191 = por %p189, %p190
      %p192 = scmp.ne.s32.totalorder %s181, %s182
      %p193 = scmp.eq.s32.totalorder %s21, 0
      %p194 = por %p192, %p193
      %p195 = scmp.ne.s32.totalorder %s181, %s182
      %p196 = scmp.eq.s32.totalorder %s22, 1
      %p197 = por %p195, %p196
      %p199 = scmp.ne.s32.totalorder %s182, %s198
      %p200 = scmp.eq.s32.totalorder %s22, 0
      %p201 = por %p199, %p200
      %p202 = scmp.le.s32.totalorder 1, %s16
      %p203 = scmp.lt.s32.totalorder %s16, 3
      %p204 = pnand %p202, %p203
      %p205 = pneg %p204
      // Predicated region
      $region9: #{tpu_custom_call.1} parent=5 // pred_check
        _
      $region10: #{tpu_custom_call.1} parent=5 // pred_check_branch
        %207 = sbr.rel (%p204) target = $region12
      $region11: #{tpu_custom_call.1} parent=5 // pred_region
        %s208 = ssub.s32 %s16, 1
        // Predicated region
        $region13: #{tpu_custom_call.1} parent=11 // pred_check
          %p209 = pneg %p63
        $region14: #{tpu_custom_call.1} parent=11 // pred_check_branch
          %211 = sbr.rel (%p209) target = $region16
        $region15: #{tpu_custom_call.1} parent=11 // pred_region
          _
        $region16: #{tpu_custom_call.1} parent=11 // pred_fallthru
          _
        // Predicated region
        $region17: #{tpu_custom_call.1} parent=11 // pred_check
          %p212 = pneg %p84
        $region18: #{tpu_custom_call.1} parent=11 // pred_check_branch
          %214 = sbr.rel (%p212) target = $region20
        $region19: #{tpu_custom_call.1} parent=11 // pred_region
          _
        $region20: #{tpu_custom_call.1} parent=11 // pred_fallthru
          _
        // Predicated region
        $region21: #{tpu_custom_call.1} parent=11 // pred_check
          %p215 = pneg %p105
        $region22: #{tpu_custom_call.1} parent=11 // pred_check_branch
          %217 = sbr.rel (%p215) target = $region24
        $region23: #{tpu_custom_call.1} parent=11 // pred_region
          _
        $region24: #{tpu_custom_call.1} parent=11 // pred_fallthru
          _
        // Predicated region
        $region25: #{tpu_custom_call.1} parent=11 // pred_check
          %p218 = pneg %p126
        $region26: #{tpu_custom_call.1} parent=11 // pred_check_branch
          %220 = sbr.rel (%p218) target = $region28
        $region27: #{tpu_custom_call.1} parent=11 // pred_region
          _
        $region28: #{tpu_custom_call.1} parent=11 // pred_fallthru
          _
        // Predicated region
        $region29: #{tpu_custom_call.1} parent=11 // pred_check
          %p221 = pneg %p147
        $region30: #{tpu_custom_call.1} parent=11 // pred_check_branch
          %223 = sbr.rel (%p221) target = $region32
        $region31: #{tpu_custom_call.1} parent=11 // pred_region
          _
        $region32: #{tpu_custom_call.1} parent=11 // pred_fallthru
          _
        // Predicated region
        $region33: #{tpu_custom_call.1} parent=11 // pred_check
          %p224 = pneg %p168
        $region34: #{tpu_custom_call.1} parent=11 // pred_check_branch
          %226 = sbr.rel (%p224) target = $region36
        $region35: #{tpu_custom_call.1} parent=11 // pred_region
          _
        $region36: #{tpu_custom_call.1} parent=11 // pred_fallthru
          _
      $region12: #{tpu_custom_call.1} parent=5 // pred_fallthru
        _
      %p227 = scmp.lt.s32.totalorder %s16, 2
      // Predicated region
      $region37: #{tpu_custom_call.1} parent=5 // pred_check
        %p228 = pneg %p227
      $region38: #{tpu_custom_call.1} parent=5 // pred_check_branch
        %230 = sbr.rel (%p228) target = $region40
      $region39: #{tpu_custom_call.1} parent=5 // pred_region
        // Predicated region
        $region41: #{tpu_custom_call.1} parent=39 // pred_check
          %p231 = pneg %p36
        $region42: #{tpu_custom_call.1} parent=39 // pred_check_branch
          %233 = sbr.rel (%p231) target = $region44
        $region43: #{tpu_custom_call.1} parent=39 // pred_region
          %s234 = smul.u32 16, %s16
          %p235 = scmp.lt.s32.totalorder %s234, 31
          %s236 = scalar_select %p235, %s234, 31
          %s237 = smul.addr %s236, 7
          %s238 = smul.addr %s237, 4
          %s239 = scalar_lea.vmem %s0, %s238
          %s240 = smul.u32 16, %s16
        $region44: #{tpu_custom_call.1} parent=39 // pred_fallthru
          _
      $region40: #{tpu_custom_call.1} parent=5 // pred_fallthru
        _
      %p241 = scmp.le.s32.totalorder 1, %s16
      %p242 = scmp.lt.s32.totalorder %s16, 3
      %p243 = pnand %p241, %p242
      %p244 = pneg %p243
      // Predicated region
      $region45: #{tpu_custom_call.1} parent=5 // pred_check
        _
      $region46: #{tpu_custom_call.1} parent=5 // pred_check_branch
        %246 = sbr.rel (%p243) target = $region48
      $region47: #{tpu_custom_call.1} parent=5 // pred_region
        %s247 = ssub.s32 %s16, 1
        %s248 = smul.u32 16, %s21
        %p249 = scmp.lt.s32.totalorder %s248, 31
        %s250 = scalar_select %p249, %s248, 31
        %s251 = smul.addr %s250, 7
        %s252 = smul.addr %s251, 4
        %s253 = scalar_lea.vmem %s0, %s252
        %p254 = pneg %p42
        %p255 = pneg %p39
        %p256 = pneg %p63
        %p257 = pneg %p60
        %p258 = pneg %p84
        %p259 = pneg %p81
        %p260 = pneg %p105
        %p261 = pneg %p102
        %p262 = pneg %p126
        %p263 = pneg %p123
        %p264 = pneg %p147
        %p265 = pneg %p144
        %p266 = pneg %p168
        %p267 = pneg %p165
        %p268 = pneg %p194
        %p269 = pneg %p191
        %s270 = sand.u32 %s181, 1
        %s271 = scalar_lea.sflag [#allocation3], %s270
        %s272 = sand.u32 %s181, 1
        %s273 = smul.addr %s272, 128
        %s274 = scalar_lea.vmem [#allocation2], %s273
        %s275 = smul.u32 16, %s21
        %p276 = scmp.lt.s32.totalorder %s275, 31
        %s277 = scalar_select %p276, %s275, 31
        %s278 = smul.addr %s277, 7
        %s279 = smul.addr %s278, 4
        %s280 = scalar_lea.vmem %s0, %s279
        %s281 = smul.u32 16, %s21
        %s282 = smul.u32 16, %s21
        %v284 = vld [vmem:[%s280] sm:$0xff]
        %v285 = vld [vmem:[%s280 + $0x8] sm:$0xff]
        %v286 = vld [vmem:[%s280 + $0x10] sm:$0xff]
        %v287 = vld [vmem:[%s280 + $0x18] sm:$0xf]
        %v288 = vld [vmem:[%s280 + $0x1c] sm:$0xff]
        %v289 = vld [vmem:[%s280 + $0x24] sm:$0xff]
        %v290 = vld [vmem:[%s280 + $0x2c] sm:$0xff]
        %v291 = vld [vmem:[%s280 + $0x34] sm:$0xf]
        %v292 = vld [vmem:[%s280 + $0x38] sm:$0xff]
        %v293 = vld [vmem:[%s280 + $0x40] sm:$0xff]
        %v294 = vld [vmem:[%s280 + $0x48] sm:$0xff]
        %v295 = vld [vmem:[%s280 + $0x50] sm:$0xf]
        %v296 = vld [vmem:[%s280 + $0x54] sm:$0xff]
        %v297 = vld [vmem:[%s280 + $0x5c] sm:$0xff]
        %v298 = vld [vmem:[%s280 + $0x64] sm:$0xff]
        %v299 = vld [vmem:[%s280 + $0x6c] sm:$0xf]
        %v300 = vld [vmem:[%s280 + $0x70] sm:$0xff]
        %v301 = vld [vmem:[%s280 + $0x78] sm:$0xff]
        %v302 = vld [vmem:[%s280 + $0x80] sm:$0xff]
        %v303 = vld [vmem:[%s280 + $0x88] sm:$0xf]
        %v304 = vld [vmem:[%s280 + $0x8c] sm:$0xff]
        %v305 = vld [vmem:[%s280 + $0x94] sm:$0xff]
        %v306 = vld [vmem:[%s280 + $0x9c] sm:$0xff]
        %v307 = vld [vmem:[%s280 + $0xa4] sm:$0xf]
        %v308 = vld [vmem:[%s280 + $0xa8] sm:$0xff]
        %v309 = vld [vmem:[%s280 + $0xb0] sm:$0xff]
        %v310 = vld [vmem:[%s280 + $0xb8] sm:$0xff]
        %v311 = vld [vmem:[%s280 + $0xc0] sm:$0xf]
        %v312 = vld [vmem:[%s280 + $0xc4] sm:$0xff]
        %v313 = vld [vmem:[%s280 + $0xcc] sm:$0xff]
        %v314 = vld [vmem:[%s280 + $0xd4] sm:$0xff]
        %v315 = vld [vmem:[%s280 + $0xdc] sm:$0xf]
        %v316 = vld [vmem:[%s280 + $0xe0] sm:$0xff]
        %v317 = vld [vmem:[%s280 + $0xe8] sm:$0xff]
        %v318 = vld [vmem:[%s280 + $0xf0] sm:$0xff]
        %v319 = vld [vmem:[%s280 + $0xf8] sm:$0xf]
        %v320 = vld [vmem:[%s280 + $0xfc] sm:$0xff]
        %v321 = vld [vmem:[%s280 + $0x104] sm:$0xff]
        %v322 = vld [vmem:[%s280 + $0x10c] sm:$0xff]
        %v323 = vld [vmem:[%s280 + $0x114] sm:$0xf]
        %v324 = vld [vmem:[%s280 + $0x118] sm:$0xff]
        %v325 = vld [vmem:[%s280 + $0x120] sm:$0xff]
        %v326 = vld [vmem:[%s280 + $0x128] sm:$0xff]
        %v327 = vld [vmem:[%s280 + $0x130] sm:$0xf]
        %v328 = vld [vmem:[%s280 + $0x134] sm:$0xff]
        %v329 = vld [vmem:[%s280 + $0x13c] sm:$0xff]
        %v330 = vld [vmem:[%s280 + $0x144] sm:$0xff]
        %v331 = vld [vmem:[%s280 + $0x14c] sm:$0xf]
        %v332 = vld [vmem:[%s280 + $0x150] sm:$0xff]
        %v333 = vld [vmem:[%s280 + $0x158] sm:$0xff]
        %v334 = vld [vmem:[%s280 + $0x160] sm:$0xff]
        %v335 = vld [vmem:[%s280 + $0x168] sm:$0xf]
        %v336 = vld [vmem:[%s280 + $0x16c] sm:$0xff]
        %v337 = vld [vmem:[%s280 + $0x174] sm:$0xff]
        %v338 = vld [vmem:[%s280 + $0x17c] sm:$0xff]
        %v339 = vld [vmem:[%s280 + $0x184] sm:$0xf]
        %v340 = vld [vmem:[%s280 + $0x188] sm:$0xff]
        %v341 = vld [vmem:[%s280 + $0x190] sm:$0xff]
        %v342 = vld [vmem:[%s280 + $0x198] sm:$0xff]
        %v343 = vld [vmem:[%s280 + $0x1a0] sm:$0xf]
        %v344 = vld [vmem:[%s280 + $0x1a4] sm:$0xff]
        %v345 = vld [vmem:[%s280 + $0x1ac] sm:$0xff]
        %v346 = vld [vmem:[%s280 + $0x1b4] sm:$0xff]
        %v347 = vld [vmem:[%s280 + $0x1bc] sm:$0xf]
        %v348 = vld [vmem:[%s1] sm:$0xf]
        %v349 = vld [vmem:[%s1 + $0x4] sm:$0xf]
        %v350 = vld [vmem:[%s1 + $0x8] sm:$0xf]
        %v351 = vld [vmem:[%s1 + $0xc] sm:$0xf]
        %v352 = vld [vmem:[%s1 + $0x10] sm:$0xf]
        %v353 = vld [vmem:[%s1 + $0x14] sm:$0xf]
        %v354 = vld [vmem:[%s1 + $0x18] sm:$0xf]
        %v355 = vld [vmem:[%s1 + $0x1c] sm:$0xf]
        %v356 = vld [vmem:[%s1 + $0x20] sm:$0xf]
        %v357 = vld [vmem:[%s1 + $0x24] sm:$0xf]
        %v358 = vld [vmem:[%s1 + $0x28] sm:$0xf]
        %v359 = vld [vmem:[%s1 + $0x2c] sm:$0xf]
        %v360 = vld [vmem:[%s1 + $0x30] sm:$0xf]
        %v361 = vld [vmem:[%s1 + $0x34] sm:$0xf]
        %v362 = vld [vmem:[%s1 + $0x38] sm:$0xf]
        %v363 = vld [vmem:[%s1 + $0x3c] sm:$0xf]
        %v364 = vld [vmem:[%s1 + $0x40] sm:$0xf]
        %v365 = vld [vmem:[%s1 + $0x44] sm:$0xf]
        %v366 = vld [vmem:[%s1 + $0x48] sm:$0xf]
        %v367 = vld [vmem:[%s1 + $0x4c] sm:$0xf]
        %v368 = vld [vmem:[%s1 + $0x50] sm:$0xf]
        %v369 = vld [vmem:[%s1 + $0x54] sm:$0xf]
        %v370 = vld [vmem:[%s1 + $0x58] sm:$0xf]
        %v371 = vld [vmem:[%s1 + $0x5c] sm:$0xf]
        %v372 = vld [vmem:[%s1 + $0x60] sm:$0xf]
        %v373 = vld [vmem:[%s1 + $0x64] sm:$0xf]
        %v374 = vld [vmem:[%s1 + $0x68] sm:$0xf]
        %v375 = vld [vmem:[%s1 + $0x6c] sm:$0xf]
        %v376 = vld [vmem:[%s1 + $0x70] sm:$0xf]
        %v377 = vld [vmem:[%s1 + $0x74] sm:$0xf]
        %v378 = vld [vmem:[%s1 + $0x78] sm:$0xf]
        %v379 = vld [vmem:[%s1 + $0x7c] sm:$0xf]
        %v380 = vld [vmem:[%s1 + $0x80] sm:$0xf]
        %v381 = vld [vmem:[%s1 + $0x84] sm:$0xf]
        %v382 = vld [vmem:[%s1 + $0x88] sm:$0xf]
        %v383 = vld [vmem:[%s1 + $0x8c] sm:$0xf]
        %v384 = vld [vmem:[%s1 + $0x90] sm:$0xf]
        %v385 = vld [vmem:[%s1 + $0x94] sm:$0xf]
        %v386 = vld [vmem:[%s1 + $0x98] sm:$0xf]
        %v387 = vld [vmem:[%s1 + $0x9c] sm:$0xf]
        %v388 = vld [vmem:[%s1 + $0xa0] sm:$0xf]
        %v389 = vld [vmem:[%s1 + $0xa4] sm:$0xf]
        %v390 = vld [vmem:[%s1 + $0xa8] sm:$0xf]
        %v391 = vld [vmem:[%s1 + $0xac] sm:$0xf]
        %v392 = vld [vmem:[%s1 + $0xb0] sm:$0xf]
        %v393 = vld [vmem:[%s1 + $0xb4] sm:$0xf]
        %v394 = vld [vmem:[%s1 + $0xb8] sm:$0xf]
        %v395 = vld [vmem:[%s1 + $0xbc] sm:$0xf]
        %v396 = vld [vmem:[%s1 + $0xc0] sm:$0xf]
        %v397 = vld [vmem:[%s1 + $0xc4] sm:$0xf]
        %v398 = vld [vmem:[%s1 + $0xc8] sm:$0xf]
        %v399 = vld [vmem:[%s1 + $0xcc] sm:$0xf]
        %v400 = vld [vmem:[%s1 + $0xd0] sm:$0xf]
        %v401 = vld [vmem:[%s1 + $0xd4] sm:$0xf]
        %v402 = vld [vmem:[%s1 + $0xd8] sm:$0xf]
        %v403 = vld [vmem:[%s1 + $0xdc] sm:$0xf]
        %v404 = vld [vmem:[%s1 + $0xe0] sm:$0xf]
        %v405 = vld [vmem:[%s1 + $0xe4] sm:$0xf]
        %v406 = vld [vmem:[%s1 + $0xe8] sm:$0xf]
        %v407 = vld [vmem:[%s1 + $0xec] sm:$0xf]
        %v408 = vld [vmem:[%s1 + $0xf0] sm:$0xf]
        %v409 = vld [vmem:[%s1 + $0xf4] sm:$0xf]
        %v410 = vld [vmem:[%s1 + $0xf8] sm:$0xf]
        %v411 = vld [vmem:[%s1 + $0xfc] sm:$0xf]
        %v412 = vld [vmem:[%s1 + $0x100] sm:$0xf]
        %v413 = vld [vmem:[%s1 + $0x104] sm:$0xf]
        %v414 = vld [vmem:[%s1 + $0x108] sm:$0xf]
        %v415 = vld [vmem:[%s1 + $0x10c] sm:$0xf]
        %v416 = vld [vmem:[%s1 + $0x110] sm:$0xf]
        %v417 = vld [vmem:[%s1 + $0x114] sm:$0xf]
        %v418 = vld [vmem:[%s1 + $0x118] sm:$0xf]
        %v419 = vld [vmem:[%s1 + $0x11c] sm:$0xf]
        %v420 = vld [vmem:[%s1 + $0x120] sm:$0xf]
        %v421 = vld [vmem:[%s1 + $0x124] sm:$0xf]
        %v422 = vld [vmem:[%s1 + $0x128] sm:$0xf]
        %v423 = vld [vmem:[%s1 + $0x12c] sm:$0xf]
        %v424 = vld [vmem:[%s1 + $0x130] sm:$0xf]
        %v425 = vld [vmem:[%s1 + $0x134] sm:$0xf]
        %v426 = vld [vmem:[%s1 + $0x138] sm:$0xf]
        %v427 = vld [vmem:[%s1 + $0x13c] sm:$0xf]
        %v428 = vld [vmem:[%s1 + $0x140] sm:$0xf]
        %v429 = vld [vmem:[%s1 + $0x144] sm:$0xf]
        %v430 = vld [vmem:[%s1 + $0x148] sm:$0xf]
        %v431 = vld [vmem:[%s1 + $0x14c] sm:$0xf]
        %v432 = vld [vmem:[%s1 + $0x150] sm:$0xf]
        %v433 = vld [vmem:[%s1 + $0x154] sm:$0xf]
        %v434 = vld [vmem:[%s1 + $0x158] sm:$0xf]
        %v435 = vld [vmem:[%s1 + $0x15c] sm:$0xf]
        %v436 = vld [vmem:[%s1 + $0x160] sm:$0xf]
        %v437 = vld [vmem:[%s1 + $0x164] sm:$0xf]
        %v438 = vld [vmem:[%s1 + $0x168] sm:$0xf]
        %v439 = vld [vmem:[%s1 + $0x16c] sm:$0xf]
        %v440 = vld [vmem:[%s1 + $0x170] sm:$0xf]
        %v441 = vld [vmem:[%s1 + $0x174] sm:$0xf]
        %v442 = vld [vmem:[%s1 + $0x178] sm:$0xf]
        %v443 = vld [vmem:[%s1 + $0x17c] sm:$0xf]
        %v444 = vld [vmem:[%s1 + $0x180] sm:$0xf]
        %v445 = vld [vmem:[%s1 + $0x184] sm:$0xf]
        %v446 = vld [vmem:[%s2] sm:$0x1]
        %v448 = vlaneseq
        %v449 = vshrl.u32 %v448, 7
        %v450 = vsub.s32 0, %v449
        %v451 = vrot.slane %v446, %v450
        %v517 = vunpack.c.l.b16 %v284
        %v518 = vunpack.c.h.b16 %v284
        %v519 = vunpack.c.l.b16 %v285
        %v520 = vunpack.c.h.b16 %v285
        %v521 = vunpack.c.l.b16 %v286
        %v522 = vunpack.c.h.b16 %v286
        %v523 = vunpack.c.l.b16 %v287
        %v524 = vunpack.c.l.b16 %v288
        %v525 = vunpack.c.h.b16 %v288
        %v526 = vunpack.c.l.b16 %v289
        %v527 = vunpack.c.h.b16 %v289
        %v528 = vunpack.c.l.b16 %v290
        %v529 = vunpack.c.h.b16 %v290
        %v530 = vunpack.c.l.b16 %v291
        %v531 = vunpack.c.l.b16 %v292
        %v532 = vunpack.c.h.b16 %v292
        %v533 = vunpack.c.l.b16 %v293
        %v534 = vunpack.c.h.b16 %v293
        %v535 = vunpack.c.l.b16 %v294
        %v536 = vunpack.c.h.b16 %v294
        %v537 = vunpack.c.l.b16 %v295
        %v538 = vunpack.c.l.b16 %v296
        %v539 = vunpack.c.h.b16 %v296
        %v540 = vunpack.c.l.b16 %v297
        %v541 = vunpack.c.h.b16 %v297
        %v542 = vunpack.c.l.b16 %v298
        %v543 = vunpack.c.h.b16 %v298
        %v544 = vunpack.c.l.b16 %v299
        %v545 = vunpack.c.l.b16 %v300
        %v546 = vunpack.c.h.b16 %v300
        %v547 = vunpack.c.l.b16 %v301
        %v548 = vunpack.c.h.b16 %v301
        %v549 = vunpack.c.l.b16 %v302
        %v550 = vunpack.c.h.b16 %v302
        %v551 = vunpack.c.l.b16 %v303
        %v552 = vunpack.c.l.b16 %v304
        %v553 = vunpack.c.h.b16 %v304
        %v554 = vunpack.c.l.b16 %v305
        %v555 = vunpack.c.h.b16 %v305
        %v556 = vunpack.c.l.b16 %v306
        %v557 = vunpack.c.h.b16 %v306
        %v558 = vunpack.c.l.b16 %v307
        %v559 = vunpack.c.l.b16 %v308
        %v560 = vunpack.c.h.b16 %v308
        %v561 = vunpack.c.l.b16 %v309
        %v562 = vunpack.c.h.b16 %v309
        %v563 = vunpack.c.l.b16 %v310
        %v564 = vunpack.c.h.b16 %v310
        %v565 = vunpack.c.l.b16 %v311
        %v566 = vunpack.c.l.b16 %v312
        %v567 = vunpack.c.h.b16 %v312
        %v568 = vunpack.c.l.b16 %v313
        %v569 = vunpack.c.h.b16 %v313
        %v570 = vunpack.c.l.b16 %v314
        %v571 = vunpack.c.h.b16 %v314
        %v572 = vunpack.c.l.b16 %v315
        %v573 = vunpack.c.l.b16 %v316
        %v574 = vunpack.c.h.b16 %v316
        %v575 = vunpack.c.l.b16 %v317
        %v576 = vunpack.c.h.b16 %v317
        %v577 = vunpack.c.l.b16 %v318
        %v578 = vunpack.c.h.b16 %v318
        %v579 = vunpack.c.l.b16 %v319
        %v580 = vunpack.c.l.b16 %v320
        %v581 = vunpack.c.h.b16 %v320
        %v582 = vunpack.c.l.b16 %v321
        %v583 = vunpack.c.h.b16 %v321
        %v584 = vunpack.c.l.b16 %v322
        %v585 = vunpack.c.h.b16 %v322
        %v586 = vunpack.c.l.b16 %v323
        %v587 = vunpack.c.l.b16 %v324
        %v588 = vunpack.c.h.b16 %v324
        %v589 = vunpack.c.l.b16 %v325
        %v590 = vunpack.c.h.b16 %v325
        %v591 = vunpack.c.l.b16 %v326
        %v592 = vunpack.c.h.b16 %v326
        %v593 = vunpack.c.l.b16 %v327
        %v594 = vunpack.c.l.b16 %v328
        %v595 = vunpack.c.h.b16 %v328
        %v596 = vunpack.c.l.b16 %v329
        %v597 = vunpack.c.h.b16 %v329
        %v598 = vunpack.c.l.b16 %v330
        %v599 = vunpack.c.h.b16 %v330
        %v600 = vunpack.c.l.b16 %v331
        %v601 = vunpack.c.l.b16 %v332
        %v602 = vunpack.c.h.b16 %v332
        %v603 = vunpack.c.l.b16 %v333
        %v604 = vunpack.c.h.b16 %v333
        %v605 = vunpack.c.l.b16 %v334
        %v606 = vunpack.c.h.b16 %v334
        %v607 = vunpack.c.l.b16 %v335
        %v608 = vunpack.c.l.b16 %v336
        %v609 = vunpack.c.h.b16 %v336
        %v610 = vunpack.c.l.b16 %v337
        %v611 = vunpack.c.h.b16 %v337
        %v612 = vunpack.c.l.b16 %v338
        %v613 = vunpack.c.h.b16 %v338
        %v614 = vunpack.c.l.b16 %v339
        %v615 = vunpack.c.l.b16 %v340
        %v616 = vunpack.c.h.b16 %v340
        %v617 = vunpack.c.l.b16 %v341
        %v618 = vunpack.c.h.b16 %v341
        %v619 = vunpack.c.l.b16 %v342
        %v620 = vunpack.c.h.b16 %v342
        %v621 = vunpack.c.l.b16 %v343
        %v622 = vunpack.c.l.b16 %v344
        %v623 = vunpack.c.h.b16 %v344
        %v624 = vunpack.c.l.b16 %v345
        %v625 = vunpack.c.h.b16 %v345
        %v626 = vunpack.c.l.b16 %v346
        %v627 = vunpack.c.h.b16 %v346
        %v628 = vunpack.c.l.b16 %v347
        %v629 = vpack.c.b16 %v524, %v517
        %v630 = vpack.c.b16 %v525, %v518
        %v631 = vpack.c.b16 %v526, %v519
        %v632 = vpack.c.b16 %v527, %v520
        %v633 = vpack.c.b16 %v528, %v521
        %v634 = vpack.c.b16 %v529, %v522
        %v635 = vpack.c.b16 %v530, %v523
        %v636 = vpack.c.b16 %v538, %v531
        %v637 = vpack.c.b16 %v539, %v532
        %v638 = vpack.c.b16 %v540, %v533
        %v639 = vpack.c.b16 %v541, %v534
        %v640 = vpack.c.b16 %v542, %v535
        %v641 = vpack.c.b16 %v543, %v536
        %v642 = vpack.c.b16 %v544, %v537
        %v643 = vpack.c.b16 %v552, %v545
        %v644 = vpack.c.b16 %v553, %v546
        %v645 = vpack.c.b16 %v554, %v547
        %v646 = vpack.c.b16 %v555, %v548
        %v647 = vpack.c.b16 %v556, %v549
        %v648 = vpack.c.b16 %v557, %v550
        %v649 = vpack.c.b16 %v558, %v551
        %v650 = vpack.c.b16 %v566, %v559
        %v651 = vpack.c.b16 %v567, %v560
        %v652 = vpack.c.b16 %v568, %v561
        %v653 = vpack.c.b16 %v569, %v562
        %v654 = vpack.c.b16 %v570, %v563
        %v655 = vpack.c.b16 %v571, %v564
        %v656 = vpack.c.b16 %v572, %v565
        %v657 = vpack.c.b16 %v580, %v573
        %v658 = vpack.c.b16 %v581, %v574
        %v659 = vpack.c.b16 %v582, %v575
        %v660 = vpack.c.b16 %v583, %v576
        %v661 = vpack.c.b16 %v584, %v577
        %v662 = vpack.c.b16 %v585, %v578
        %v663 = vpack.c.b16 %v586, %v579
        %v664 = vpack.c.b16 %v594, %v587
        %v665 = vpack.c.b16 %v595, %v588
        %v666 = vpack.c.b16 %v596, %v589
        %v667 = vpack.c.b16 %v597, %v590
        %v668 = vpack.c.b16 %v598, %v591
        %v669 = vpack.c.b16 %v599, %v592
        %v670 = vpack.c.b16 %v600, %v593
        %v671 = vpack.c.b16 %v608, %v601
        %v672 = vpack.c.b16 %v609, %v602
        %v673 = vpack.c.b16 %v610, %v603
        %v674 = vpack.c.b16 %v611, %v604
        %v675 = vpack.c.b16 %v612, %v605
        %v676 = vpack.c.b16 %v613, %v606
        %v677 = vpack.c.b16 %v614, %v607
        %v678 = vpack.c.b16 %v622, %v615
        %v679 = vpack.c.b16 %v623, %v616
        %v680 = vpack.c.b16 %v624, %v617
        %v681 = vpack.c.b16 %v625, %v618
        %v682 = vpack.c.b16 %v626, %v619
        %v683 = vpack.c.b16 %v627, %v620
        %v684 = vpack.c.b16 %v628, %v621
        %v831 = vunpack.c.l.b16 %v348
        %v832 = vunpack.c.l.b16 %v349
        %v833 = vunpack.c.l.b16 %v350
        %v834 = vunpack.c.l.b16 %v351
        %v835 = vunpack.c.l.b16 %v352
        %v836 = vunpack.c.l.b16 %v353
        %v837 = vunpack.c.l.b16 %v354
        %v838 = vunpack.c.l.b16 %v355
        %v839 = vunpack.c.l.b16 %v356
        %v840 = vunpack.c.l.b16 %v357
        %v841 = vunpack.c.l.b16 %v358
        %v842 = vunpack.c.l.b16 %v359
        %v843 = vunpack.c.l.b16 %v360
        %v844 = vunpack.c.l.b16 %v361
        %v845 = vunpack.c.l.b16 %v362
        %v846 = vunpack.c.l.b16 %v363
        %v847 = vunpack.c.l.b16 %v364
        %v848 = vunpack.c.l.b16 %v365
        %v849 = vunpack.c.l.b16 %v366
        %v850 = vunpack.c.l.b16 %v367
        %v851 = vunpack.c.l.b16 %v368
        %v852 = vunpack.c.l.b16 %v369
        %v853 = vunpack.c.l.b16 %v370
        %v854 = vunpack.c.l.b16 %v371
        %v855 = vunpack.c.l.b16 %v372
        %v856 = vunpack.c.l.b16 %v373
        %v857 = vunpack.c.l.b16 %v374
        %v858 = vunpack.c.l.b16 %v375
        %v859 = vunpack.c.l.b16 %v376
        %v860 = vunpack.c.l.b16 %v377
        %v861 = vunpack.c.l.b16 %v378
        %v862 = vunpack.c.l.b16 %v379
        %v863 = vunpack.c.l.b16 %v380
        %v864 = vunpack.c.l.b16 %v381
        %v865 = vunpack.c.l.b16 %v382
        %v866 = vunpack.c.l.b16 %v383
        %v867 = vunpack.c.l.b16 %v384
        %v868 = vunpack.c.l.b16 %v385
        %v869 = vunpack.c.l.b16 %v386
        %v870 = vunpack.c.l.b16 %v387
        %v871 = vunpack.c.l.b16 %v388
        %v872 = vunpack.c.l.b16 %v389
        %v873 = vunpack.c.l.b16 %v390
        %v874 = vunpack.c.l.b16 %v391
        %v875 = vunpack.c.l.b16 %v392
        %v876 = vunpack.c.l.b16 %v393
        %v877 = vunpack.c.l.b16 %v394
        %v878 = vunpack.c.l.b16 %v395
        %v879 = vunpack.c.l.b16 %v396
        %v880 = vunpack.c.l.b16 %v397
        %v881 = vunpack.c.l.b16 %v398
        %v882 = vunpack.c.l.b16 %v399
        %v883 = vunpack.c.l.b16 %v400
        %v884 = vunpack.c.l.b16 %v401
        %v885 = vunpack.c.l.b16 %v402
        %v886 = vunpack.c.l.b16 %v403
        %v887 = vunpack.c.l.b16 %v404
        %v888 = vunpack.c.l.b16 %v405
        %v889 = vunpack.c.l.b16 %v406
        %v890 = vunpack.c.l.b16 %v407
        %v891 = vunpack.c.l.b16 %v408
        %v892 = vunpack.c.l.b16 %v409
        %v893 = vunpack.c.l.b16 %v410
        %v894 = vunpack.c.l.b16 %v411
        %v895 = vunpack.c.l.b16 %v412
        %v896 = vunpack.c.l.b16 %v413
        %v897 = vunpack.c.l.b16 %v414
        %v898 = vunpack.c.l.b16 %v415
        %v899 = vunpack.c.l.b16 %v416
        %v900 = vunpack.c.l.b16 %v417
        %v901 = vunpack.c.l.b16 %v418
        %v902 = vunpack.c.l.b16 %v419
        %v903 = vunpack.c.l.b16 %v420
        %v904 = vunpack.c.l.b16 %v421
        %v905 = vunpack.c.l.b16 %v422
        %v906 = vunpack.c.l.b16 %v423
        %v907 = vunpack.c.l.b16 %v424
        %v908 = vunpack.c.l.b16 %v425
        %v909 = vunpack.c.l.b16 %v426
        %v910 = vunpack.c.l.b16 %v427
        %v911 = vunpack.c.l.b16 %v428
        %v912 = vunpack.c.l.b16 %v429
        %v913 = vunpack.c.l.b16 %v430
        %v914 = vunpack.c.l.b16 %v431
        %v915 = vunpack.c.l.b16 %v432
        %v916 = vunpack.c.l.b16 %v433
        %v917 = vunpack.c.l.b16 %v434
        %v918 = vunpack.c.l.b16 %v435
        %v919 = vunpack.c.l.b16 %v436
        %v920 = vunpack.c.l.b16 %v437
        %v921 = vunpack.c.l.b16 %v438
        %v922 = vunpack.c.l.b16 %v439
        %v923 = vunpack.c.l.b16 %v440
        %v924 = vunpack.c.l.b16 %v441
        %v925 = vunpack.c.l.b16 %v442
        %v926 = vunpack.c.l.b16 %v443
        %v927 = vunpack.c.l.b16 %v444
        %v928 = vunpack.c.l.b16 %v445
        %v929 = vpack.c.b16 %v832, %v831
        %v930 = vpack.c.b16 %v834, %v833
        %v931 = vpack.c.b16 %v836, %v835
        %v932 = vpack.c.b16 %v838, %v837
        %v933 = vpack.c.b16 %v840, %v839
        %v934 = vpack.c.b16 %v842, %v841
        %v935 = vpack.c.b16 %v844, %v843
        %v936 = vpack.c.b16 %v846, %v845
        %v937 = vpack.c.b16 %v848, %v847
        %v938 = vpack.c.b16 %v850, %v849
        %v939 = vpack.c.b16 %v852, %v851
        %v940 = vpack.c.b16 %v854, %v853
        %v941 = vpack.c.b16 %v856, %v855
        %v942 = vpack.c.b16 %v858, %v857
        %v943 = vpack.c.b16 %v860, %v859
        %v944 = vpack.c.b16 %v862, %v861
        %v945 = vpack.c.b16 %v864, %v863
        %v946 = vpack.c.b16 %v866, %v865
        %v947 = vpack.c.b16 %v868, %v867
        %v948 = vpack.c.b16 %v870, %v869
        %v949 = vpack.c.b16 %v872, %v871
        %v950 = vpack.c.b16 %v874, %v873
        %v951 = vpack.c.b16 %v876, %v875
        %v952 = vpack.c.b16 %v878, %v877
        %v953 = vpack.c.b16 %v880, %v879
        %v954 = vpack.c.b16 %v882, %v881
        %v955 = vpack.c.b16 %v884, %v883
        %v956 = vpack.c.b16 %v886, %v885
        %v957 = vpack.c.b16 %v888, %v887
        %v958 = vpack.c.b16 %v890, %v889
        %v959 = vpack.c.b16 %v892, %v891
        %v960 = vpack.c.b16 %v894, %v893
        %v961 = vpack.c.b16 %v896, %v895
        %v962 = vpack.c.b16 %v898, %v897
        %v963 = vpack.c.b16 %v900, %v899
        %v964 = vpack.c.b16 %v902, %v901
        %v965 = vpack.c.b16 %v904, %v903
        %v966 = vpack.c.b16 %v906, %v905
        %v967 = vpack.c.b16 %v908, %v907
        %v968 = vpack.c.b16 %v910, %v909
        %v969 = vpack.c.b16 %v912, %v911
        %v970 = vpack.c.b16 %v914, %v913
        %v971 = vpack.c.b16 %v916, %v915
        %v972 = vpack.c.b16 %v918, %v917
        %v973 = vpack.c.b16 %v920, %v919
        %v974 = vpack.c.b16 %v922, %v921
        %v975 = vpack.c.b16 %v924, %v923
        %v976 = vpack.c.b16 %v926, %v925
        %v977 = vpack.c.b16 %v928, %v927
        %vm1027 = vcmask 130048
        %v1029 = vsel %vm1027, %v635, 0
        %v1032 = vsel %vm1027, %v642, 0
        %v1035 = vsel %vm1027, %v649, 0
        %v1038 = vsel %vm1027, %v656, 0
        %v1041 = vsel %vm1027, %v663, 0
        %v1044 = vsel %vm1027, %v670, 0
        %v1047 = vsel %vm1027, %v677, 0
        %v1050 = vsel %vm1027, %v684, 0
        %1052 = vmatprep.subr.bf16.mxu0 0
        %1053 = vmatpush1.bf16.msra.mxu0 %v929
        %1054 = vmatprep.subr.bf16.mxu0 0
        %1055 = vmatpush1.bf16.msra.mxu0 %v930
        %1056 = vmatprep.subr.bf16.mxu0 0
        %1057 = vmatpush1.bf16.msra.mxu0 %v931
        %1058 = vmatprep.subr.bf16.mxu0 0
        %1059 = vmatpush1.bf16.msra.mxu0 %v932
        %1060 = vmatprep.subr.bf16.mxu0 0
        %1061 = vmatpush1.bf16.msra.mxu0 %v933
        %1062 = vmatprep.subr.bf16.mxu0 0
        %1063 = vmatpush1.bf16.msra.mxu0 %v934
        %1064 = vmatprep.subr.bf16.mxu0 0
        %1065 = vmatpush1.bf16.msra.mxu0 %v935
        %1066 = vmatprep.subr.bf16.mxu0 0
        %1067 = vmatpush1.bf16.msra.mxu0 %v936
        %1068 = vmatprep.subr.bf16.mxu0 0
        %1069 = vmatpush1.bf16.msra.mxu0 %v937
        %1070 = vmatprep.subr.bf16.mxu0 0
        %1071 = vmatpush1.bf16.msra.mxu0 %v938
        %1072 = vmatprep.subr.bf16.mxu0 0
        %1073 = vmatpush1.bf16.msra.mxu0 %v939
        %1074 = vmatprep.subr.bf16.mxu0 0
        %1075 = vmatpush1.bf16.msra.mxu0 %v940
        %1076 = vmatprep.subr.bf16.mxu0 0
        %1077 = vmatpush1.bf16.msra.mxu0 %v941
        %1078 = vmatprep.subr.bf16.mxu0 0
        %1079 = vmatpush1.bf16.msra.mxu0 %v942
        %1080 = vmatprep.subr.bf16.mxu0 0
        %1081 = vmatpush1.bf16.msra.mxu0 %v943
        %1082 = vmatprep.subr.bf16.mxu0 0
        %1083 = vmatpush1.bf16.msra.mxu0 %v944
        %1084 = vmatprep.mubr.bf16.mxu0 %v630
        %1085 = vmatmul.mubr.bf16.gmra.mrb[0].mxu0 %v629
        %v1086 = vpop.f32.mrb[0].mxu0
        %v1087 = vadd.f32 %v451, %v1086
        %v1088 = vpop.f32.mrb[0].mxu0
        %v1089 = vpop.f32.mrb[0].mxu0
        %v1090 = vadd.f32 %v451, %v1089
        %v1091 = vpop.f32.mrb[0].mxu0
        %1092 = vmatprep.mubr.bf16.mxu0 %v637
        %1093 = vmatmul.mubr.bf16.gmra.mrb[0].mxu0 %v636
        %v1094 = vpop.f32.mrb[0].mxu0
        %v1095 = vadd.f32 %v451, %v1094
        %v1096 = vpop.f32.mrb[0].mxu0
        %v1097 = vpop.f32.mrb[0].mxu0
        %v1098 = vadd.f32 %v451, %v1097
        %v1099 = vpop.f32.mrb[0].mxu0
        %1100 = vmatprep.mubr.bf16.mxu0 %v644
        %1101 = vmatmul.mubr.bf16.gmra.mrb[0].mxu0 %v643
        %v1102 = vpop.f32.mrb[0].mxu0
        %v1103 = vadd.f32 %v451, %v1102
        %v1104 = vpop.f32.mrb[0].mxu0
        %v1105 = vpop.f32.mrb[0].mxu0
        %v1106 = vadd.f32 %v451, %v1105
        %v1107 = vpop.f32.mrb[0].mxu0
        %1108 = vmatprep.mubr.bf16.mxu0 %v651
        %1109 = vmatmul.mubr.bf16.gmra.mrb[0].mxu0 %v650
        %v1110 = vpop.f32.mrb[0].mxu0
        %v1111 = vadd.f32 %v451, %v1110
        %v1112 = vpop.f32.mrb[0].mxu0
        %v1113 = vpop.f32.mrb[0].mxu0
        %v1114 = vadd.f32 %v451, %v1113
        %v1115 = vpop.f32.mrb[0].mxu0
        %1116 = vmatprep.mubr.bf16.mxu0 %v658
        %1117 = vmatmul.mubr.bf16.gmra.mrb[0].mxu0 %v657
        %v1118 = vpop.f32.mrb[0].mxu0
        %v1119 = vadd.f32 %v451, %v1118
        %v1120 = vpop.f32.mrb[0].mxu0
        %v1121 = vpop.f32.mrb[0].mxu0
        %v1122 = vadd.f32 %v451, %v1121
        %v1123 = vpop.f32.mrb[0].mxu0
        %1124 = vmatprep.mubr.bf16.mxu0 %v665
        %1125 = vmatmul.mubr.bf16.gmra.mrb[0].mxu0 %v664
        %v1126 = vpop.f32.mrb[0].mxu0
        %v1127 = vadd.f32 %v451, %v1126
        %v1128 = vpop.f32.mrb[0].mxu0
        %v1129 = vpop.f32.mrb[0].mxu0
        %v1130 = vadd.f32 %v451, %v1129
        %v1131 = vpop.f32.mrb[0].mxu0
        %1132 = vmatprep.mubr.bf16.mxu0 %v672
        %1133 = vmatmul.mubr.bf16.gmra.mrb[0].mxu0 %v671
        %v1134 = vpop.f32.mrb[0].mxu0
        %v1135 = vadd.f32 %v451, %v1134
        %v1136 = vpop.f32.mrb[0].mxu0
        %v1137 = vpop.f32.mrb[0].mxu0
        %v1138 = vadd.f32 %v451, %v1137
        %v1139 = vpop.f32.mrb[0].mxu0
        %1140 = vmatprep.mubr.bf16.mxu0 %v679
        %1141 = vmatmul.mubr.bf16.gmra.mrb[0].mxu0 %v678
        %v1142 = vpop.f32.mrb[0].mxu0
        %v1143 = vadd.f32 %v451, %v1142
        %v1144 = vpop.f32.mrb[0].mxu0
        %v1145 = vpop.f32.mrb[0].mxu0
        %v1146 = vadd.f32 %v451, %v1145
        %v1147 = vpop.f32.mrb[0].mxu0
        %1148 = vdwg.mxu0
        %1149 = vmatprep.subr.bf16.mxu0 0
        %1150 = vmatpush1.bf16.msra.mxu0 %v945
        %1151 = vmatprep.subr.bf16.mxu0 0
        %1152 = vmatpush1.bf16.msra.mxu0 %v946
        %1153 = vmatprep.subr.bf16.mxu0 0
        %1154 = vmatpush1.bf16.msra.mxu0 %v947
        %1155 = vmatprep.subr.bf16.mxu0 0
        %1156 = vmatpush1.bf16.msra.mxu0 %v948
        %1157 = vmatprep.subr.bf16.mxu0 0
        %1158 = vmatpush1.bf16.msra.mxu0 %v949
        %1159 = vmatprep.subr.bf16.mxu0 0
        %1160 = vmatpush1.bf16.msra.mxu0 %v950
        %1161 = vmatprep.subr.bf16.mxu0 0
        %1162 = vmatpush1.bf16.msra.mxu0 %v951
        %1163 = vmatprep.subr.bf16.mxu0 0
        %1164 = vmatpush1.bf16.msra.mxu0 %v952
        %1165 = vmatprep.subr.bf16.mxu0 0
        %1166 = vmatpush1.bf16.msra.mxu0 %v953
        %1167 = vmatprep.subr.bf16.mxu0 0
        %1168 = vmatpush1.bf16.msra.mxu0 %v954
        %1169 = vmatprep.subr.bf16.mxu0 0
        %1170 = vmatpush1.bf16.msra.mxu0 %v955
        %1171 = vmatprep.subr.bf16.mxu0 0
        %1172 = vmatpush1.bf16.msra.mxu0 %v956
        %1173 = vmatprep.subr.bf16.mxu0 0
        %1174 = vmatpush1.bf16.msra.mxu0 %v957
        %1175 = vmatprep.subr.bf16.mxu0 0
        %1176 = vmatpush1.bf16.msra.mxu0 %v958
        %1177 = vmatprep.subr.bf16.mxu0 0
        %1178 = vmatpush1.bf16.msra.mxu0 %v959
        %1179 = vmatprep.subr.bf16.mxu0 0
        %1180 = vmatpush1.bf16.msra.mxu0 %v960
        %1181 = vmatprep.mubr.bf16.mxu0 %v632
        %1182 = vmatmul.mubr.bf16.gmra.mrb[0].mxu0 %v631
        %v1183 = vpop.f32.mrb[0].mxu0
        %v1184 = vadd.f32 %v1087, %v1183
        %v1185 = vpop.f32.mrb[0].mxu0
        %v1186 = vpop.f32.mrb[0].mxu0
        %v1187 = vadd.f32 %v1090, %v1186
        %v1188 = vpop.f32.mrb[0].mxu0
        %1189 = vmatprep.mubr.bf16.mxu0 %v639
        %1190 = vmatmul.mubr.bf16.gmra.mrb[0].mxu0 %v638
        %v1191 = vpop.f32.mrb[0].mxu0
        %v1192 = vadd.f32 %v1095, %v1191
        %v1193 = vpop.f32.mrb[0].mxu0
        %v1194 = vpop.f32.mrb[0].mxu0
        %v1195 = vadd.f32 %v1098, %v1194
        %v1196 = vpop.f32.mrb[0].mxu0
        %1197 = vmatprep.mubr.bf16.mxu0 %v646
        %1198 = vmatmul.mubr.bf16.gmra.mrb[0].mxu0 %v645
        %v1199 = vpop.f32.mrb[0].mxu0
        %v1200 = vadd.f32 %v1103, %v1199
        %v1201 = vpop.f32.mrb[0].mxu0
        %v1202 = vpop.f32.mrb[0].mxu0
        %v1203 = vadd.f32 %v1106, %v1202
        %v1204 = vpop.f32.mrb[0].mxu0
        %1205 = vmatprep.mubr.bf16.mxu0 %v653
        %1206 = vmatmul.mubr.bf16.gmra.mrb[0].mxu0 %v652
        %v1207 = vpop.f32.mrb[0].mxu0
        %v1208 = vadd.f32 %v1111, %v1207
        %v1209 = vpop.f32.mrb[0].mxu0
        %v1210 = vpop.f32.mrb[0].mxu0
        %v1211 = vadd.f32 %v1114, %v1210
        %v1212 = vpop.f32.mrb[0].mxu0
        %1213 = vmatprep.mubr.bf16.mxu0 %v660
        %1214 = vmatmul.mubr.bf16.gmra.mrb[0].mxu0 %v659
        %v1215 = vpop.f32.mrb[0].mxu0
        %v1216 = vadd.f32 %v1119, %v1215
        %v1217 = vpop.f32.mrb[0].mxu0
        %v1218 = vpop.f32.mrb[0].mxu0
        %v1219 = vadd.f32 %v1122, %v1218
        %v1220 = vpop.f32.mrb[0].mxu0
        %1221 = vmatprep.mubr.bf16.mxu0 %v667
        %1222 = vmatmul.mubr.bf16.gmra.mrb[0].mxu0 %v666
        %v1223 = vpop.f32.mrb[0].mxu0
        %v1224 = vadd.f32 %v1127, %v1223
        %v1225 = vpop.f32.mrb[0].mxu0
        %v1226 = vpop.f32.mrb[0].mxu0
        %v1227 = vadd.f32 %v1130, %v1226
        %v1228 = vpop.f32.mrb[0].mxu0
        %1229 = vmatprep.mubr.bf16.mxu0 %v674
        %1230 = vmatmul.mubr.bf16.gmra.mrb[0].mxu0 %v673
        %v1231 = vpop.f32.mrb[0].mxu0
        %v1232 = vadd.f32 %v1135, %v1231
        %v1233 = vpop.f32.mrb[0].mxu0
        %v1234 = vpop.f32.mrb[0].mxu0
        %v1235 = vadd.f32 %v1138, %v1234
        %v1236 = vpop.f32.mrb[0].mxu0
        %1237 = vmatprep.mubr.bf16.mxu0 %v681
        %1238 = vmatmul.mubr.bf16.gmra.mrb[0].mxu0 %v680
        %v1239 = vpop.f32.mrb[0].mxu0
        %v1240 = vadd.f32 %v1143, %v1239
        %v1241 = vpop.f32.mrb[0].mxu0
        %v1242 = vpop.f32.mrb[0].mxu0
        %v1243 = vadd.f32 %v1146, %v1242
        %v1244 = vpop.f32.mrb[0].mxu0
        %1245 = vdwg.mxu0
        %1246 = vmatprep.subr.bf16.mxu0 0
        %1247 = vmatpush1.bf16.msra.mxu0 %v961
        %1248 = vmatprep.subr.bf16.mxu0 0
        %1249 = vmatpush1.bf16.msra.mxu0 %v962
        %1250 = vmatprep.subr.bf16.mxu0 0
        %1251 = vmatpush1.bf16.msra.mxu0 %v963
        %1252 = vmatprep.subr.bf16.mxu0 0
        %1253 = vmatpush1.bf16.msra.mxu0 %v964
        %1254 = vmatprep.subr.bf16.mxu0 0
        %1255 = vmatpush1.bf16.msra.mxu0 %v965
        %1256 = vmatprep.subr.bf16.mxu0 0
        %1257 = vmatpush1.bf16.msra.mxu0 %v966
        %1258 = vmatprep.subr.bf16.mxu0 0
        %1259 = vmatpush1.bf16.msra.mxu0 %v967
        %1260 = vmatprep.subr.bf16.mxu0 0
        %1261 = vmatpush1.bf16.msra.mxu0 %v968
        %1262 = vmatprep.subr.bf16.mxu0 0
        %1263 = vmatpush1.bf16.msra.mxu0 %v969
        %1264 = vmatprep.subr.bf16.mxu0 0
        %1265 = vmatpush1.bf16.msra.mxu0 %v970
        %1266 = vmatprep.subr.bf16.mxu0 0
        %1267 = vmatpush1.bf16.msra.mxu0 %v971
        %1268 = vmatprep.subr.bf16.mxu0 0
        %1269 = vmatpush1.bf16.msra.mxu0 %v972
        %1270 = vmatprep.subr.bf16.mxu0 0
        %1271 = vmatpush1.bf16.msra.mxu0 %v973
        %1272 = vmatprep.subr.bf16.mxu0 0
        %1273 = vmatpush1.bf16.msra.mxu0 %v974
        %1274 = vmatprep.subr.bf16.mxu0 0
        %1275 = vmatpush1.bf16.msra.mxu0 %v975
        %1276 = vmatprep.subr.bf16.mxu0 0
        %1277 = vmatpush1.bf16.msra.mxu0 %v976
        %1278 = vmatprep.mubr.bf16.mxu0 %v634
        %1279 = vmatmul.mubr.bf16.gmra.mrb[0].mxu0 %v633
        %v1280 = vpop.f32.mrb[0].mxu0
        %v1281 = vadd.f32 %v1184, %v1280
        %v1282 = vpop.f32.mrb[0].mxu0
        %v1283 = vpop.f32.mrb[0].mxu0
        %v1284 = vadd.f32 %v1187, %v1283
        %v1285 = vpop.f32.mrb[0].mxu0
        %1286 = vmatprep.mubr.bf16.mxu0 %v641
        %1287 = vmatmul.mubr.bf16.gmra.mrb[0].mxu0 %v640
        %v1288 = vpop.f32.mrb[0].mxu0
        %v1289 = vadd.f32 %v1192, %v1288
        %v1290 = vpop.f32.mrb[0].mxu0
        %v1291 = vpop.f32.mrb[0].mxu0
        %v1292 = vadd.f32 %v1195, %v1291
        %v1293 = vpop.f32.mrb[0].mxu0
        %1294 = vmatprep.mubr.bf16.mxu0 %v648
        %1295 = vmatmul.mubr.bf16.gmra.mrb[0].mxu0 %v647
        %v1296 = vpop.f32.mrb[0].mxu0
        %v1297 = vadd.f32 %v1200, %v1296
        %v1298 = vpop.f32.mrb[0].mxu0
        %v1299 = vpop.f32.mrb[0].mxu0
        %v1300 = vadd.f32 %v1203, %v1299
        %v1301 = vpop.f32.mrb[0].mxu0
        %1302 = vmatprep.mubr.bf16.mxu0 %v655
        %1303 = vmatmul.mubr.bf16.gmra.mrb[0].mxu0 %v654
        %v1304 = vpop.f32.mrb[0].mxu0
        %v1305 = vadd.f32 %v1208, %v1304
        %v1306 = vpop.f32.mrb[0].mxu0
        %v1307 = vpop.f32.mrb[0].mxu0
        %v1308 = vadd.f32 %v1211, %v1307
        %v1309 = vpop.f32.mrb[0].mxu0
        %1310 = vmatprep.mubr.bf16.mxu0 %v662
        %1311 = vmatmul.mubr.bf16.gmra.mrb[0].mxu0 %v661
        %v1312 = vpop.f32.mrb[0].mxu0
        %v1313 = vadd.f32 %v1216, %v1312
        %v1314 = vpop.f32.mrb[0].mxu0
        %v1315 = vpop.f32.mrb[0].mxu0
        %v1316 = vadd.f32 %v1219, %v1315
        %v1317 = vpop.f32.mrb[0].mxu0
        %1318 = vmatprep.mubr.bf16.mxu0 %v669
        %1319 = vmatmul.mubr.bf16.gmra.mrb[0].mxu0 %v668
        %v1320 = vpop.f32.mrb[0].mxu0
        %v1321 = vadd.f32 %v1224, %v1320
        %v1322 = vpop.f32.mrb[0].mxu0
        %v1323 = vpop.f32.mrb[0].mxu0
        %v1324 = vadd.f32 %v1227, %v1323
        %v1325 = vpop.f32.mrb[0].mxu0
        %1326 = vmatprep.mubr.bf16.mxu0 %v676
        %1327 = vmatmul.mubr.bf16.gmra.mrb[0].mxu0 %v675
        %v1328 = vpop.f32.mrb[0].mxu0
        %v1329 = vadd.f32 %v1232, %v1328
        %v1330 = vpop.f32.mrb[0].mxu0
        %v1331 = vpop.f32.mrb[0].mxu0
        %v1332 = vadd.f32 %v1235, %v1331
        %v1333 = vpop.f32.mrb[0].mxu0
        %1334 = vmatprep.mubr.bf16.mxu0 %v683
        %1335 = vmatmul.mubr.bf16.gmra.mrb[0].mxu0 %v682
        %v1336 = vpop.f32.mrb[0].mxu0
        %v1337 = vadd.f32 %v1240, %v1336
        %v1338 = vpop.f32.mrb[0].mxu0
        %v1339 = vpop.f32.mrb[0].mxu0
        %v1340 = vadd.f32 %v1243, %v1339
        %v1341 = vpop.f32.mrb[0].mxu0
        %1342 = vdwg.mxu0
        %1343 = vmatprep.subr.bf16.mxu0 0
        %1344 = vmatpush1.bf16.msra.mxu0 %v977
        %1345 = vmatprep.subr.bf16.mxu0 0
        %1346 = vmatpush1.bf16.msra.mxu0 0
        %1347 = vmatprep.subr.bf16.mxu0 0
        %1348 = vmatpush1.bf16.msra.mxu0 0
        %1349 = vmatprep.subr.bf16.mxu0 0
        %1350 = vmatpush1.bf16.msra.mxu0 0
        %1351 = vmatprep.subr.bf16.mxu0 0
        %1352 = vmatpush1.bf16.msra.mxu0 0
        %1353 = vmatprep.subr.bf16.mxu0 0
        %1354 = vmatpush1.bf16.msra.mxu0 0
        %1355 = vmatprep.subr.bf16.mxu0 0
        %1356 = vmatpush1.bf16.msra.mxu0 0
        %1357 = vmatprep.subr.bf16.mxu0 0
        %1358 = vmatpush1.bf16.msra.mxu0 0
        %1359 = vmatprep.subr.bf16.mxu0 0
        %1360 = vmatpush1.bf16.msra.mxu0 0
        %1361 = vmatprep.subr.bf16.mxu0 0
        %1362 = vmatpush1.bf16.msra.mxu0 0
        %1363 = vmatprep.subr.bf16.mxu0 0
        %1364 = vmatpush1.bf16.msra.mxu0 0
        %1365 = vmatprep.subr.bf16.mxu0 0
        %1366 = vmatpush1.bf16.msra.mxu0 0
        %1367 = vmatprep.subr.bf16.mxu0 0
        %1368 = vmatpush1.bf16.msra.mxu0 0
        %1369 = vmatprep.subr.bf16.mxu0 0
        %1370 = vmatpush1.bf16.msra.mxu0 0
        %1371 = vmatprep.subr.bf16.mxu0 0
        %1372 = vmatpush1.bf16.msra.mxu0 0
        %1373 = vmatprep.subr.bf16.mxu0 0
        %1374 = vmatpush1.bf16.msra.mxu0 0
        %1375 = vmatprep.mubr.bf16.mxu0 0
        %1376 = vmatmul.mubr.bf16.gmra.mrb[0].mxu0 %v1029
        %v1377 = vpop.f32.mrb[0].mxu0
        %v1378 = vadd.f32 %v1281, %v1377
        %v1379 = vpop.f32.mrb[0].mxu0
        %v1380 = vpop.f32.mrb[0].mxu0
        %v1381 = vadd.f32 %v1284, %v1380
        %v1382 = vpop.f32.mrb[0].mxu0
        %1383 = vmatprep.mubr.bf16.mxu0 0
        %1384 = vmatmul.mubr.bf16.gmra.mrb[0].mxu0 %v1032
        %v1385 = vpop.f32.mrb[0].mxu0
        %v1386 = vadd.f32 %v1289, %v1385
        %v1387 = vpop.f32.mrb[0].mxu0
        %v1388 = vpop.f32.mrb[0].mxu0
        %v1389 = vadd.f32 %v1292, %v1388
        %v1390 = vpop.f32.mrb[0].mxu0
        %1391 = vmatprep.mubr.bf16.mxu0 0
        %1392 = vmatmul.mubr.bf16.gmra.mrb[0].mxu0 %v1035
        %v1393 = vpop.f32.mrb[0].mxu0
        %v1394 = vadd.f32 %v1297, %v1393
        %v1395 = vpop.f32.mrb[0].mxu0
        %v1396 = vpop.f32.mrb[0].mxu0
        %v1397 = vadd.f32 %v1300, %v1396
        %v1398 = vpop.f32.mrb[0].mxu0
        %1399 = vmatprep.mubr.bf16.mxu0 0
        %1400 = vmatmul.mubr.bf16.gmra.mrb[0].mxu0 %v1038
        %v1401 = vpop.f32.mrb[0].mxu0
        %v1402 = vadd.f32 %v1305, %v1401
        %v1403 = vpop.f32.mrb[0].mxu0
        %v1404 = vpop.f32.mrb[0].mxu0
        %v1405 = vadd.f32 %v1308, %v1404
        %v1406 = vpop.f32.mrb[0].mxu0
        %1407 = vmatprep.mubr.bf16.mxu0 0
        %1408 = vmatmul.mubr.bf16.gmra.mrb[0].mxu0 %v1041
        %v1409 = vpop.f32.mrb[0].mxu0
        %v1410 = vadd.f32 %v1313, %v1409
        %v1411 = vpop.f32.mrb[0].mxu0
        %v1412 = vpop.f32.mrb[0].mxu0
        %v1413 = vadd.f32 %v1316, %v1412
        %v1414 = vpop.f32.mrb[0].mxu0
        %1415 = vmatprep.mubr.bf16.mxu0 0
        %1416 = vmatmul.mubr.bf16.gmra.mrb[0].mxu0 %v1044
        %v1417 = vpop.f32.mrb[0].mxu0
        %v1418 = vadd.f32 %v1321, %v1417
        %v1419 = vpop.f32.mrb[0].mxu0
        %v1420 = vpop.f32.mrb[0].mxu0
        %v1421 = vadd.f32 %v1324, %v1420
        %v1422 = vpop.f32.mrb[0].mxu0
        %1423 = vmatprep.mubr.bf16.mxu0 0
        %1424 = vmatmul.mubr.bf16.gmra.mrb[0].mxu0 %v1047
        %v1425 = vpop.f32.mrb[0].mxu0
        %v1426 = vadd.f32 %v1329, %v1425
        %v1427 = vpop.f32.mrb[0].mxu0
        %v1428 = vpop.f32.mrb[0].mxu0
        %v1429 = vadd.f32 %v1332, %v1428
        %v1430 = vpop.f32.mrb[0].mxu0
        %1431 = vmatprep.mubr.bf16.mxu0 0
        %1432 = vmatmul.mubr.bf16.gmra.mrb[0].mxu0 %v1050
        %v1433 = vpop.f32.mrb[0].mxu0
        %v1434 = vadd.f32 %v1337, %v1433
        %v1435 = vpop.f32.mrb[0].mxu0
        %v1436 = vpop.f32.mrb[0].mxu0
        %v1437 = vadd.f32 %v1340, %v1436
        %v1438 = vpop.f32.mrb[0].mxu0
        %1439 = vdwg.mxu0
        %v1440 = vmax.f32 %v1378, 0.0
        %v1441 = vmax.f32 %v1381, 0.0
        %v1442 = vmax.f32 %v1386, 0.0
        %v1443 = vmax.f32 %v1389, 0.0
        %v1444 = vmax.f32 %v1394, 0.0
        %v1445 = vmax.f32 %v1397, 0.0
        %v1446 = vmax.f32 %v1402, 0.0
        %v1447 = vmax.f32 %v1405, 0.0
        %v1448 = vmax.f32 %v1410, 0.0
        %v1449 = vmax.f32 %v1413, 0.0
        %v1450 = vmax.f32 %v1418, 0.0
        %v1451 = vmax.f32 %v1421, 0.0
        %v1452 = vmax.f32 %v1426, 0.0
        %v1453 = vmax.f32 %v1429, 0.0
        %v1454 = vmax.f32 %v1434, 0.0
        %v1455 = vmax.f32 %v1437, 0.0
        %v1456 = vld [vmem:[%s3] sm:$0xff]
        %v1457 = vld [vmem:[%s3 + $0x8] sm:$0xff]
        %v1458 = vld [vmem:[%s3 + $0x10] sm:$0xff]
        %v1459 = vld [vmem:[%s3 + $0x18] sm:$0xff]
        %v1460 = vld [vmem:[%s3 + $0x20] sm:$0xff]
        %v1461 = vld [vmem:[%s3 + $0x28] sm:$0xff]
        %v1462 = vld [vmem:[%s3 + $0x30] sm:$0xff]
        %v1463 = vld [vmem:[%s3 + $0x38] sm:$0xff]
        %v1464 = vld [vmem:[%s3 + $0x40] sm:$0xff]
        %v1465 = vld [vmem:[%s3 + $0x48] sm:$0xff]
        %v1466 = vld [vmem:[%s3 + $0x50] sm:$0xff]
        %v1467 = vld [vmem:[%s3 + $0x58] sm:$0xff]
        %v1468 = vld [vmem:[%s3 + $0x60] sm:$0xff]
        %v1469 = vld [vmem:[%s3 + $0x68] sm:$0xff]
        %v1470 = vld [vmem:[%s3 + $0x70] sm:$0xff]
        %v1471 = vld [vmem:[%s3 + $0x78] sm:$0xff]
        %v1472 = vld [vmem:[%s4] sm:$0x1]
        %v1474 = vlaneseq
        %v1475 = vshrl.u32 %v1474, 7
        %v1476 = vsub.s32 0, %v1475
        %v1477 = vrot.slane %v1472, %v1476
        %1479 = vmatprep.subr.mxu0 0.0
        %1480 = vmatpush1.msra.mxu0 %v1456
        %1481 = vmatprep.subr.mxu0 0.0
        %1482 = vmatpush1.msra.mxu0 %v1457
        %1483 = vmatprep.subr.mxu0 0.0
        %1484 = vmatpush1.msra.mxu0 %v1458
        %1485 = vmatprep.subr.mxu0 0.0
        %1486 = vmatpush1.msra.mxu0 %v1459
        %1487 = vmatprep.subr.mxu0 0.0
        %1488 = vmatpush1.msra.mxu0 %v1460
        %1489 = vmatprep.subr.mxu0 0.0
        %1490 = vmatpush1.msra.mxu0 %v1461
        %1491 = vmatprep.subr.mxu0 0.0
        %1492 = vmatpush1.msra.mxu0 %v1462
        %1493 = vmatprep.subr.mxu0 0.0
        %1494 = vmatpush1.msra.mxu0 %v1463
        %1495 = vmatprep.subr.mxu0 0.0
        %1496 = vmatpush1.msra.mxu0 %v1464
        %1497 = vmatprep.subr.mxu0 0.0
        %1498 = vmatpush1.msra.mxu0 %v1465
        %1499 = vmatprep.subr.mxu0 0.0
        %1500 = vmatpush1.msra.mxu0 %v1466
        %1501 = vmatprep.subr.mxu0 0.0
        %1502 = vmatpush1.msra.mxu0 %v1467
        %1503 = vmatprep.subr.mxu0 0.0
        %1504 = vmatpush1.msra.mxu0 %v1468
        %1505 = vmatprep.subr.mxu0 0.0
        %1506 = vmatpush1.msra.mxu0 %v1469
        %1507 = vmatprep.subr.mxu0 0.0
        %1508 = vmatpush1.msra.mxu0 %v1470
        %1509 = vmatprep.subr.mxu0 0.0
        %1510 = vmatpush1.msra.mxu0 %v1471
        %1511 = vmatprep.subr.mxu0 0.0
        %1512 = vmatpush1.msra.mxu0 0.0
        %1513 = vmatprep.subr.mxu0 0.0
        %1514 = vmatpush1.msra.mxu0 0.0
        %1515 = vmatprep.subr.mxu0 0.0
        %1516 = vmatpush1.msra.mxu0 0.0
        %1517 = vmatprep.subr.mxu0 0.0
        %1518 = vmatpush1.msra.mxu0 0.0
        %1519 = vmatprep.subr.mxu0 0.0
        %1520 = vmatpush1.msra.mxu0 0.0
        %1521 = vmatprep.subr.mxu0 0.0
        %1522 = vmatpush1.msra.mxu0 0.0
        %1523 = vmatprep.subr.mxu0 0.0
        %1524 = vmatpush1.msra.mxu0 0.0
        %1525 = vmatprep.subr.mxu0 0.0
        %1526 = vmatpush1.msra.mxu0 0.0
        %1527 = vmatprep.subr.mxu0 0.0
        %1528 = vmatpush1.msra.mxu0 0.0
        %1529 = vmatprep.subr.mxu0 0.0
        %1530 = vmatpush1.msra.mxu0 0.0
        %1531 = vmatprep.subr.mxu0 0.0
        %1532 = vmatpush1.msra.mxu0 0.0
        %1533 = vmatprep.subr.mxu0 0.0
        %1534 = vmatpush1.msra.mxu0 0.0
        %1535 = vmatprep.subr.mxu0 0.0
        %1536 = vmatpush1.msra.mxu0 0.0
        %1537 = vmatprep.subr.mxu0 0.0
        %1538 = vmatpush1.msra.mxu0 0.0
        %1539 = vmatprep.subr.mxu0 0.0
        %1540 = vmatpush1.msra.mxu0 0.0
        %1541 = vmatprep.subr.mxu0 0.0
        %1542 = vmatpush1.msra.mxu0 0.0
        %1543 = vmatprep.mubr.f32.mxu0 0.0
        %1544 = vmatmul.mubr.f32.gmra.mrb[0].mxu0 %v1440
        %v1545 = vpop.f32.mrb[0].mxu0
        %v1546 = vadd.f32 %v1477, %v1545
        %v1547 = vpop.f32.mrb[0].mxu0
        %1548 = vmatprep.mubr.f32.mxu0 0.0
        %1549 = vmatmul.mubr.f32.gmra.mrb[0].mxu0 %v1441
        %v1550 = vpop.f32.mrb[0].mxu0
        %v1551 = vadd.f32 %v1477, %v1550
        %v1552 = vpop.f32.mrb[0].mxu0
        %1553 = vmatprep.mubr.f32.mxu0 0.0
        %1554 = vmatmul.mubr.f32.gmra.mrb[0].mxu0 %v1442
        %v1555 = vpop.f32.mrb[0].mxu0
        %v1556 = vadd.f32 %v1477, %v1555
        %v1557 = vpop.f32.mrb[0].mxu0
        %1558 = vmatprep.mubr.f32.mxu0 0.0
        %1559 = vmatmul.mubr.f32.gmra.mrb[0].mxu0 %v1443
        %v1560 = vpop.f32.mrb[0].mxu0
        %v1561 = vadd.f32 %v1477, %v1560
        %v1562 = vpop.f32.mrb[0].mxu0
        %1563 = vmatprep.mubr.f32.mxu0 0.0
        %1564 = vmatmul.mubr.f32.gmra.mrb[0].mxu0 %v1444
        %v1565 = vpop.f32.mrb[0].mxu0
        %v1566 = vadd.f32 %v1477, %v1565
        %v1567 = vpop.f32.mrb[0].mxu0
        %1568 = vmatprep.mubr.f32.mxu0 0.0
        %1569 = vmatmul.mubr.f32.gmra.mrb[0].mxu0 %v1445
        %v1570 = vpop.f32.mrb[0].mxu0
        %v1571 = vadd.f32 %v1477, %v1570
        %v1572 = vpop.f32.mrb[0].mxu0
        %1573 = vmatprep.mubr.f32.mxu0 0.0
        %1574 = vmatmul.mubr.f32.gmra.mrb[0].mxu0 %v1446
        %v1575 = vpop.f32.mrb[0].mxu0
        %v1576 = vadd.f32 %v1477, %v1575
        %v1577 = vpop.f32.mrb[0].mxu0
        %1578 = vmatprep.mubr.f32.mxu0 0.0
        %1579 = vmatmul.mubr.f32.gmra.mrb[0].mxu0 %v1447
        %v1580 = vpop.f32.mrb[0].mxu0
        %v1581 = vadd.f32 %v1477, %v1580
        %v1582 = vpop.f32.mrb[0].mxu0
        %1583 = vmatprep.mubr.f32.mxu0 0.0
        %1584 = vmatmul.mubr.f32.gmra.mrb[0].mxu0 %v1448
        %v1585 = vpop.f32.mrb[0].mxu0
        %v1586 = vadd.f32 %v1477, %v1585
        %v1587 = vpop.f32.mrb[0].mxu0
        %1588 = vmatprep.mubr.f32.mxu0 0.0
        %1589 = vmatmul.mubr.f32.gmra.mrb[0].mxu0 %v1449
        %v1590 = vpop.f32.mrb[0].mxu0
        %v1591 = vadd.f32 %v1477, %v1590
        %v1592 = vpop.f32.mrb[0].mxu0
        %1593 = vmatprep.mubr.f32.mxu0 0.0
        %1594 = vmatmul.mubr.f32.gmra.mrb[0].mxu0 %v1450
        %v1595 = vpop.f32.mrb[0].mxu0
        %v1596 = vadd.f32 %v1477, %v1595
        %v1597 = vpop.f32.mrb[0].mxu0
        %1598 = vmatprep.mubr.f32.mxu0 0.0
        %1599 = vmatmul.mubr.f32.gmra.mrb[0].mxu0 %v1451
        %v1600 = vpop.f32.mrb[0].mxu0
        %v1601 = vadd.f32 %v1477, %v1600
        %v1602 = vpop.f32.mrb[0].mxu0
        %1603 = vmatprep.mubr.f32.mxu0 0.0
        %1604 = vmatmul.mubr.f32.gmra.mrb[0].mxu0 %v1452
        %v1605 = vpop.f32.mrb[0].mxu0
        %v1606 = vadd.f32 %v1477, %v1605
        %v1607 = vpop.f32.mrb[0].mxu0
        %1608 = vmatprep.mubr.f32.mxu0 0.0
        %1609 = vmatmul.mubr.f32.gmra.mrb[0].mxu0 %v1453
        %v1610 = vpop.f32.mrb[0].mxu0
        %v1611 = vadd.f32 %v1477, %v1610
        %v1612 = vpop.f32.mrb[0].mxu0
        %1613 = vmatprep.mubr.f32.mxu0 0.0
        %1614 = vmatmul.mubr.f32.gmra.mrb[0].mxu0 %v1454
        %v1615 = vpop.f32.mrb[0].mxu0
        %v1616 = vadd.f32 %v1477, %v1615
        %v1617 = vpop.f32.mrb[0].mxu0
        %1618 = vmatprep.mubr.f32.mxu0 0.0
        %1619 = vmatmul.mubr.f32.gmra.mrb[0].mxu0 %v1455
        %v1620 = vpop.f32.mrb[0].mxu0
        %v1621 = vadd.f32 %v1477, %v1620
        %v1622 = vpop.f32.mrb[0].mxu0
        %1623 = vdwg.mxu0
        %v1624 = vmax.f32 %v1546, 0.0
        %v1625 = vmax.f32 %v1551, 0.0
        %v1626 = vmax.f32 %v1556, 0.0
        %v1627 = vmax.f32 %v1561, 0.0
        %v1628 = vmax.f32 %v1566, 0.0
        %v1629 = vmax.f32 %v1571, 0.0
        %v1630 = vmax.f32 %v1576, 0.0
        %v1631 = vmax.f32 %v1581, 0.0
        %v1632 = vmax.f32 %v1586, 0.0
        %v1633 = vmax.f32 %v1591, 0.0
        %v1634 = vmax.f32 %v1596, 0.0
        %v1635 = vmax.f32 %v1601, 0.0
        %v1636 = vmax.f32 %v1606, 0.0
        %v1637 = vmax.f32 %v1611, 0.0
        %v1638 = vmax.f32 %v1616, 0.0
        %v1639 = vmax.f32 %v1621, 0.0
        %v1640 = vld [vmem:[%s5] sm:$0xff]
        %v1641 = vld [vmem:[%s5 + $0x8] sm:$0xff]
        %v1642 = vld [vmem:[%s5 + $0x10] sm:$0xff]
        %v1643 = vld [vmem:[%s5 + $0x18] sm:$0xff]
        %v1644 = vld [vmem:[%s5 + $0x20] sm:$0xff]
        %v1645 = vld [vmem:[%s5 + $0x28] sm:$0xff]
        %v1646 = vld [vmem:[%s5 + $0x30] sm:$0xff]
        %v1647 = vld [vmem:[%s5 + $0x38] sm:$0xff]
        %v1648 = vld [vmem:[%s5 + $0x40] sm:$0xff]
        %v1649 = vld [vmem:[%s5 + $0x48] sm:$0xff]
        %v1650 = vld [vmem:[%s5 + $0x50] sm:$0xff]
        %v1651 = vld [vmem:[%s5 + $0x58] sm:$0xff]
        %v1652 = vld [vmem:[%s5 + $0x60] sm:$0xff]
        %v1653 = vld [vmem:[%s5 + $0x68] sm:$0xff]
        %v1654 = vld [vmem:[%s5 + $0x70] sm:$0xff]
        %v1655 = vld [vmem:[%s5 + $0x78] sm:$0xff]
        %v1656 = vld [vmem:[%s6] sm:$0x1]
        %v1658 = vlaneseq
        %v1659 = vshrl.u32 %v1658, 7
        %v1660 = vsub.s32 0, %v1659
        %v1661 = vrot.slane %v1656, %v1660
        %1663 = vmatprep.subr.mxu0 0.0
        %1664 = vmatpush1.msra.mxu0 %v1640
        %1665 = vmatprep.subr.mxu0 0.0
        %1666 = vmatpush1.msra.mxu0 %v1641
        %1667 = vmatprep.subr.mxu0 0.0
        %1668 = vmatpush1.msra.mxu0 %v1642
        %1669 = vmatprep.subr.mxu0 0.0
        %1670 = vmatpush1.msra.mxu0 %v1643
        %1671 = vmatprep.subr.mxu0 0.0
        %1672 = vmatpush1.msra.mxu0 %v1644
        %1673 = vmatprep.subr.mxu0 0.0
        %1674 = vmatpush1.msra.mxu0 %v1645
        %1675 = vmatprep.subr.mxu0 0.0
        %1676 = vmatpush1.msra.mxu0 %v1646
        %1677 = vmatprep.subr.mxu0 0.0
        %1678 = vmatpush1.msra.mxu0 %v1647
        %1679 = vmatprep.subr.mxu0 0.0
        %1680 = vmatpush1.msra.mxu0 %v1648
        %1681 = vmatprep.subr.mxu0 0.0
        %1682 = vmatpush1.msra.mxu0 %v1649
        %1683 = vmatprep.subr.mxu0 0.0
        %1684 = vmatpush1.msra.mxu0 %v1650
        %1685 = vmatprep.subr.mxu0 0.0
        %1686 = vmatpush1.msra.mxu0 %v1651
        %1687 = vmatprep.subr.mxu0 0.0
        %1688 = vmatpush1.msra.mxu0 %v1652
        %1689 = vmatprep.subr.mxu0 0.0
        %1690 = vmatpush1.msra.mxu0 %v1653
        %1691 = vmatprep.subr.mxu0 0.0
        %1692 = vmatpush1.msra.mxu0 %v1654
        %1693 = vmatprep.subr.mxu0 0.0
        %1694 = vmatpush1.msra.mxu0 %v1655
        %1695 = vmatprep.subr.mxu0 0.0
        %1696 = vmatpush1.msra.mxu0 0.0
        %1697 = vmatprep.subr.mxu0 0.0
        %1698 = vmatpush1.msra.mxu0 0.0
        %1699 = vmatprep.subr.mxu0 0.0
        %1700 = vmatpush1.msra.mxu0 0.0
        %1701 = vmatprep.subr.mxu0 0.0
        %1702 = vmatpush1.msra.mxu0 0.0
        %1703 = vmatprep.subr.mxu0 0.0
        %1704 = vmatpush1.msra.mxu0 0.0
        %1705 = vmatprep.subr.mxu0 0.0
        %1706 = vmatpush1.msra.mxu0 0.0
        %1707 = vmatprep.subr.mxu0 0.0
        %1708 = vmatpush1.msra.mxu0 0.0
        %1709 = vmatprep.subr.mxu0 0.0
        %1710 = vmatpush1.msra.mxu0 0.0
        %1711 = vmatprep.subr.mxu0 0.0
        %1712 = vmatpush1.msra.mxu0 0.0
        %1713 = vmatprep.subr.mxu0 0.0
        %1714 = vmatpush1.msra.mxu0 0.0
        %1715 = vmatprep.subr.mxu0 0.0
        %1716 = vmatpush1.msra.mxu0 0.0
        %1717 = vmatprep.subr.mxu0 0.0
        %1718 = vmatpush1.msra.mxu0 0.0
        %1719 = vmatprep.subr.mxu0 0.0
        %1720 = vmatpush1.msra.mxu0 0.0
        %1721 = vmatprep.subr.mxu0 0.0
        %1722 = vmatpush1.msra.mxu0 0.0
        %1723 = vmatprep.subr.mxu0 0.0
        %1724 = vmatpush1.msra.mxu0 0.0
        %1725 = vmatprep.subr.mxu0 0.0
        %1726 = vmatpush1.msra.mxu0 0.0
        %1727 = vmatprep.mubr.f32.mxu0 0.0
        %1728 = vmatmul.mubr.f32.gmra.mrb[0].mxu0 %v1624
        %v1729 = vpop.f32.mrb[0].mxu0
        %v1730 = vadd.f32 %v1661, %v1729
        %v1731 = vpop.f32.mrb[0].mxu0
        %1732 = vmatprep.mubr.f32.mxu0 0.0
        %1733 = vmatmul.mubr.f32.gmra.mrb[0].mxu0 %v1625
        %v1734 = vpop.f32.mrb[0].mxu0
        %v1735 = vadd.f32 %v1661, %v1734
        %v1736 = vpop.f32.mrb[0].mxu0
        %1737 = vmatprep.mubr.f32.mxu0 0.0
        %1738 = vmatmul.mubr.f32.gmra.mrb[0].mxu0 %v1626
        %v1739 = vpop.f32.mrb[0].mxu0
        %v1740 = vadd.f32 %v1661, %v1739
        %v1741 = vpop.f32.mrb[0].mxu0
        %1742 = vmatprep.mubr.f32.mxu0 0.0
        %1743 = vmatmul.mubr.f32.gmra.mrb[0].mxu0 %v1627
        %v1744 = vpop.f32.mrb[0].mxu0
        %v1745 = vadd.f32 %v1661, %v1744
        %v1746 = vpop.f32.mrb[0].mxu0
        %1747 = vmatprep.mubr.f32.mxu0 0.0
        %1748 = vmatmul.mubr.f32.gmra.mrb[0].mxu0 %v1628
        %v1749 = vpop.f32.mrb[0].mxu0
        %v1750 = vadd.f32 %v1661, %v1749
        %v1751 = vpop.f32.mrb[0].mxu0
        %1752 = vmatprep.mubr.f32.mxu0 0.0
        %1753 = vmatmul.mubr.f32.gmra.mrb[0].mxu0 %v1629
        %v1754 = vpop.f32.mrb[0].mxu0
        %v1755 = vadd.f32 %v1661, %v1754
        %v1756 = vpop.f32.mrb[0].mxu0
        %1757 = vmatprep.mubr.f32.mxu0 0.0
        %1758 = vmatmul.mubr.f32.gmra.mrb[0].mxu0 %v1630
        %v1759 = vpop.f32.mrb[0].mxu0
        %v1760 = vadd.f32 %v1661, %v1759
        %v1761 = vpop.f32.mrb[0].mxu0
        %1762 = vmatprep.mubr.f32.mxu0 0.0
        %1763 = vmatmul.mubr.f32.gmra.mrb[0].mxu0 %v1631
        %v1764 = vpop.f32.mrb[0].mxu0
        %v1765 = vadd.f32 %v1661, %v1764
        %v1766 = vpop.f32.mrb[0].mxu0
        %1767 = vmatprep.mubr.f32.mxu0 0.0
        %1768 = vmatmul.mubr.f32.gmra.mrb[0].mxu0 %v1632
        %v1769 = vpop.f32.mrb[0].mxu0
        %v1770 = vadd.f32 %v1661, %v1769
        %v1771 = vpop.f32.mrb[0].mxu0
        %1772 = vmatprep.mubr.f32.mxu0 0.0
        %1773 = vmatmul.mubr.f32.gmra.mrb[0].mxu0 %v1633
        %v1774 = vpop.f32.mrb[0].mxu0
        %v1775 = vadd.f32 %v1661, %v1774
        %v1776 = vpop.f32.mrb[0].mxu0
        %1777 = vmatprep.mubr.f32.mxu0 0.0
        %1778 = vmatmul.mubr.f32.gmra.mrb[0].mxu0 %v1634
        %v1779 = vpop.f32.mrb[0].mxu0
        %v1780 = vadd.f32 %v1661, %v1779
        %v1781 = vpop.f32.mrb[0].mxu0
        %1782 = vmatprep.mubr.f32.mxu0 0.0
        %1783 = vmatmul.mubr.f32.gmra.mrb[0].mxu0 %v1635
        %v1784 = vpop.f32.mrb[0].mxu0
        %v1785 = vadd.f32 %v1661, %v1784
        %v1786 = vpop.f32.mrb[0].mxu0
        %1787 = vmatprep.mubr.f32.mxu0 0.0
        %1788 = vmatmul.mubr.f32.gmra.mrb[0].mxu0 %v1636
        %v1789 = vpop.f32.mrb[0].mxu0
        %v1790 = vadd.f32 %v1661, %v1789
        %v1791 = vpop.f32.mrb[0].mxu0
        %1792 = vmatprep.mubr.f32.mxu0 0.0
        %1793 = vmatmul.mubr.f32.gmra.mrb[0].mxu0 %v1637
        %v1794 = vpop.f32.mrb[0].mxu0
        %v1795 = vadd.f32 %v1661, %v1794
        %v1796 = vpop.f32.mrb[0].mxu0
        %1797 = vmatprep.mubr.f32.mxu0 0.0
        %1798 = vmatmul.mubr.f32.gmra.mrb[0].mxu0 %v1638
        %v1799 = vpop.f32.mrb[0].mxu0
        %v1800 = vadd.f32 %v1661, %v1799
        %v1801 = vpop.f32.mrb[0].mxu0
        %1802 = vmatprep.mubr.f32.mxu0 0.0
        %1803 = vmatmul.mubr.f32.gmra.mrb[0].mxu0 %v1639
        %v1804 = vpop.f32.mrb[0].mxu0
        %v1805 = vadd.f32 %v1661, %v1804
        %v1806 = vpop.f32.mrb[0].mxu0
        %1807 = vdwg.mxu0
        %1808 = vmax.xlane.f32.xlu0 %v1730
        %v1809 = vpop.xlane.xlu0 %1808
        %1810 = vmax.xlane.f32.xlu0 %v1735
        %v1811 = vpop.xlane.xlu0 %1810
        %1812 = vmax.xlane.f32.xlu0 %v1740
        %v1813 = vpop.xlane.xlu0 %1812
        %1814 = vmax.xlane.f32.xlu0 %v1745
        %v1815 = vpop.xlane.xlu0 %1814
        %1816 = vmax.xlane.f32.xlu0 %v1750
        %v1817 = vpop.xlane.xlu0 %1816
        %1818 = vmax.xlane.f32.xlu0 %v1755
        %v1819 = vpop.xlane.xlu0 %1818
        %1820 = vmax.xlane.f32.xlu0 %v1760
        %v1821 = vpop.xlane.xlu0 %1820
        %1822 = vmax.xlane.f32.xlu0 %v1765
        %v1823 = vpop.xlane.xlu0 %1822
        %1824 = vmax.xlane.f32.xlu0 %v1770
        %v1825 = vpop.xlane.xlu0 %1824
        %1826 = vmax.xlane.f32.xlu0 %v1775
        %v1827 = vpop.xlane.xlu0 %1826
        %1828 = vmax.xlane.f32.xlu0 %v1780
        %v1829 = vpop.xlane.xlu0 %1828
        %1830 = vmax.xlane.f32.xlu0 %v1785
        %v1831 = vpop.xlane.xlu0 %1830
        %1832 = vmax.xlane.f32.xlu0 %v1790
        %v1833 = vpop.xlane.xlu0 %1832
        %1834 = vmax.xlane.f32.xlu0 %v1795
        %v1835 = vpop.xlane.xlu0 %1834
        %1836 = vmax.xlane.f32.xlu0 %v1800
        %v1837 = vpop.xlane.xlu0 %1836
        %1838 = vmax.xlane.f32.xlu0 %v1805
        %v1839 = vpop.xlane.xlu0 %1838
        %v1840 = vsub.f32 %v1730, %v1809
        %v1841 = vsub.f32 %v1735, %v1811
        %v1842 = vsub.f32 %v1740, %v1813
        %v1843 = vsub.f32 %v1745, %v1815
        %v1844 = vsub.f32 %v1750, %v1817
        %v1845 = vsub.f32 %v1755, %v1819
        %v1846 = vsub.f32 %v1760, %v1821
        %v1847 = vsub.f32 %v1765, %v1823
        %v1848 = vsub.f32 %v1770, %v1825
        %v1849 = vsub.f32 %v1775, %v1827
        %v1850 = vsub.f32 %v1780, %v1829
        %v1851 = vsub.f32 %v1785, %v1831
        %v1852 = vsub.f32 %v1790, %v1833
        %v1853 = vsub.f32 %v1795, %v1835
        %v1854 = vsub.f32 %v1800, %v1837
        %v1855 = vsub.f32 %v1805, %v1839
        %v1856 = vmul.f32 %v1840, 1.442695
        %v1857 = vpow.pop %v1856
        %v1858 = vmul.f32 %v1841, 1.442695
        %v1859 = vpow.pop %v1858
        %v1860 = vmul.f32 %v1842, 1.442695
        %v1861 = vpow.pop %v1860
        %v1862 = vmul.f32 %v1843, 1.442695
        %v1863 = vpow.pop %v1862
        %v1864 = vmul.f32 %v1844, 1.442695
        %v1865 = vpow.pop %v1864
        %v1866 = vmul.f32 %v1845, 1.442695
        %v1867 = vpow.pop %v1866
        %v1868 = vmul.f32 %v1846, 1.442695
        %v1869 = vpow.pop %v1868
        %v1870 = vmul.f32 %v1847, 1.442695
        %v1871 = vpow.pop %v1870
        %v1872 = vmul.f32 %v1848, 1.442695
        %v1873 = vpow.pop %v1872
        %v1874 = vmul.f32 %v1849, 1.442695
        %v1875 = vpow.pop %v1874
        %v1876 = vmul.f32 %v1850, 1.442695
        %v1877 = vpow.pop %v1876
        %v1878 = vmul.f32 %v1851, 1.442695
        %v1879 = vpow.pop %v1878
        %v1880 = vmul.f32 %v1852, 1.442695
        %v1881 = vpow.pop %v1880
        %v1882 = vmul.f32 %v1853, 1.442695
        %v1883 = vpow.pop %v1882
        %v1884 = vmul.f32 %v1854, 1.442695
        %v1885 = vpow.pop %v1884
        %v1886 = vmul.f32 %v1855, 1.442695
        %v1887 = vpow.pop %v1886
        %1888 = vadd.xlane.f32.xlu0 %v1857
        %v1889 = vpop.xlane.xlu0 %1888
        %1890 = vadd.xlane.f32.xlu0 %v1859
        %v1891 = vpop.xlane.xlu0 %1890
        %1892 = vadd.xlane.f32.xlu0 %v1861
        %v1893 = vpop.xlane.xlu0 %1892
        %1894 = vadd.xlane.f32.xlu0 %v1863
        %v1895 = vpop.xlane.xlu0 %1894
        %1896 = vadd.xlane.f32.xlu0 %v1865
        %v1897 = vpop.xlane.xlu0 %1896
        %1898 = vadd.xlane.f32.xlu0 %v1867
        %v1899 = vpop.xlane.xlu0 %1898
        %1900 = vadd.xlane.f32.xlu0 %v1869
        %v1901 = vpop.xlane.xlu0 %1900
        %1902 = vadd.xlane.f32.xlu0 %v1871
        %v1903 = vpop.xlane.xlu0 %1902
        %1904 = vadd.xlane.f32.xlu0 %v1873
        %v1905 = vpop.xlane.xlu0 %1904
        %1906 = vadd.xlane.f32.xlu0 %v1875
        %v1907 = vpop.xlane.xlu0 %1906
        %1908 = vadd.xlane.f32.xlu0 %v1877
        %v1909 = vpop.xlane.xlu0 %1908
        %1910 = vadd.xlane.f32.xlu0 %v1879
        %v1911 = vpop.xlane.xlu0 %1910
        %1912 = vadd.xlane.f32.xlu0 %v1881
        %v1913 = vpop.xlane.xlu0 %1912
        %1914 = vadd.xlane.f32.xlu0 %v1883
        %v1915 = vpop.xlane.xlu0 %1914
        %1916 = vadd.xlane.f32.xlu0 %v1885
        %v1917 = vpop.xlane.xlu0 %1916
        %1918 = vadd.xlane.f32.xlu0 %v1887
        %v1919 = vpop.xlane.xlu0 %1918
        %v1920 = vrcp.pop %v1889
        %v1921 = vrcp.pop %v1891
        %v1922 = vrcp.pop %v1893
        %v1923 = vrcp.pop %v1895
        %v1924 = vrcp.pop %v1897
        %v1925 = vrcp.pop %v1899
        %v1926 = vrcp.pop %v1901
        %v1927 = vrcp.pop %v1903
        %v1928 = vrcp.pop %v1905
        %v1929 = vrcp.pop %v1907
        %v1930 = vrcp.pop %v1909
        %v1931 = vrcp.pop %v1911
        %v1932 = vrcp.pop %v1913
        %v1933 = vrcp.pop %v1915
        %v1934 = vrcp.pop %v1917
        %v1935 = vrcp.pop %v1919
        %v1936 = vmul.f32 %v1857, %v1920
        %v1937 = vmul.f32 %v1859, %v1921
        %v1938 = vmul.f32 %v1861, %v1922
        %v1939 = vmul.f32 %v1863, %v1923
        %v1940 = vmul.f32 %v1865, %v1924
        %v1941 = vmul.f32 %v1867, %v1925
        %v1942 = vmul.f32 %v1869, %v1926
        %v1943 = vmul.f32 %v1871, %v1927
        %v1944 = vmul.f32 %v1873, %v1928
        %v1945 = vmul.f32 %v1875, %v1929
        %v1946 = vmul.f32 %v1877, %v1930
        %v1947 = vmul.f32 %v1879, %v1931
        %v1948 = vmul.f32 %v1881, %v1932
        %v1949 = vmul.f32 %v1883, %v1933
        %v1950 = vmul.f32 %v1885, %v1934
        %v1951 = vmul.f32 %v1887, %v1935
        %1952 = vst [vmem:[%s274] sm:$0xff] %v1936
        %1953 = vst [vmem:[%s274 + $0x8] sm:$0xff] %v1937
        %1954 = vst [vmem:[%s274 + $0x10] sm:$0xff] %v1938
        %1955 = vst [vmem:[%s274 + $0x18] sm:$0xff] %v1939
        %1956 = vst [vmem:[%s274 + $0x20] sm:$0xff] %v1940
        %1957 = vst [vmem:[%s274 + $0x28] sm:$0xff] %v1941
        %1958 = vst [vmem:[%s274 + $0x30] sm:$0xff] %v1942
        %1959 = vst [vmem:[%s274 + $0x38] sm:$0xff] %v1943
        %1960 = vst [vmem:[%s274 + $0x40] sm:$0xff] %v1944
        %1961 = vst [vmem:[%s274 + $0x48] sm:$0xff] %v1945
        %1962 = vst [vmem:[%s274 + $0x50] sm:$0xff] %v1946
        %1963 = vst [vmem:[%s274 + $0x58] sm:$0xff] %v1947
        %1964 = vst [vmem:[%s274 + $0x60] sm:$0xff] %v1948
        %1965 = vst [vmem:[%s274 + $0x68] sm:$0xff] %v1949
        %1966 = vst [vmem:[%s274 + $0x70] sm:$0xff] %v1950
        %1967 = vst [vmem:[%s274 + $0x78] sm:$0xff] %v1951
        %s1968 = sand.u32 %s181, 1
        %s1969 = scalar_lea.sflag [#allocation3], %s1968
        %s1970 = sand.u32 %s181, 1
        %s1971 = smul.addr %s1970, 128
        %s1972 = scalar_lea.vmem [#allocation2], %s1971
        // Predicated region
        $region49: #{tpu_custom_call.1} parent=47 // pred_check
          %p1973 = pneg %p191
        $region50: #{tpu_custom_call.1} parent=47 // pred_check_branch
          %1975 = sbr.rel (%p1973) target = $region52
        $region51: #{tpu_custom_call.1} parent=47 // pred_region
          %s1976 = smul.u32 16, %s21
          %s1978 = ssub.s32 2048, 2048
          %1979 = vsyncadd %s1969, %s1978
          %s1980 = smul.addr %s1976, 128
          %s1981 = scalar_lea.hbm %s7, %s1980
          %s1982 = sshll.u32 %s1972, 4
          %s1983 = int_to_ptr.vmem [resolvable:$true] %s1982
          %1988 = dma.vmem_to_hbm [thread:$0]  %s1983, 2048, %s1981, %s1969, 128, 128, 8
        $region52: #{tpu_custom_call.1} parent=47 // pred_fallthru
          _
      $region48: #{tpu_custom_call.1} parent=5 // pred_fallthru
        _
      %p1989 = scmp.le.s32.totalorder 2, %s16
      // Predicated region
      $region53: #{tpu_custom_call.1} parent=5 // pred_check
        %p1990 = pneg %p1989
      $region54: #{tpu_custom_call.1} parent=5 // pred_check_branch
        %1992 = sbr.rel (%p1990) target = $region56
      $region55: #{tpu_custom_call.1} parent=5 // pred_region
        %s1993 = ssub.s32 %s16, 2
        // Predicated region
        $region57: #{tpu_custom_call.1} parent=55 // pred_check
          %p1994 = pneg %p197
        $region58: #{tpu_custom_call.1} parent=55 // pred_check_branch
          %1996 = sbr.rel (%p1994) target = $region60
        $region59: #{tpu_custom_call.1} parent=55 // pred_region
          %s1997 = sand.u32 %s182, 1
          %s1998 = scalar_lea.sflag [#allocation3], %s1997
          %s1999 = sand.u32 %s182, 1
          %s2000 = smul.addr %s1999, 128
          %s2001 = scalar_lea.vmem [#allocation2], %s2000
          %2002 = dma.done %s1998, 2048
        $region60: #{tpu_custom_call.1} parent=55 // pred_fallthru
          _
      $region56: #{tpu_custom_call.1} parent=5 // pred_fallthru
        _
    $region6: #{tpu_custom_call.1} parent=1 // loop_footer
      %s20 = sadd.s32 1, %s16
    $region7: #{tpu_custom_call.1} parent=1 // loop_footer_branch
      %15 = sbr.rel target = $region3
    $region8: #{tpu_custom_call.1} parent=1 // loop_exit
      _
    %2003 = vsyncpa [#allocation3], 1
    %s2004 = scalar_lea.sflag [#allocation3], 1
    %2005 = vsyncpa %s2004, 1

</llo_original>
